<compile_context>
chip_gen: v6e
topology: v6e:2x2x1
jax: 0.10.0
libtpu: 0.0.40
codegen_flags: <defaults>
</compile_context>

<pallas_src>
import jax
import jax.numpy as jnp
from jax.experimental import pallas as pl
from jax.experimental.pallas import tpu as pltpu


# -----------------------------------------------------------------------------
# Helpers
# -----------------------------------------------------------------------------
def _round_up(v, m):
    return ((v + m - 1) // m) * m


def _largest_col_tile(dim, target):
    """Largest multiple of 128 that divides `dim` and is <= target, else `dim`."""
    if dim <= target:
        return dim
    t = (target // 128) * 128
    while t >= 128:
        if dim % t == 0:
            return t
        t -= 128
    return dim


def _choose_tm(M, tm_target=256):
    """Pick (tm, padded_M).  tm is a multiple of 8; for large M the M-tile
    count is forced even so both v7x TensorCores get work."""
    if M <= tm_target:
        tm = _round_up(M, 8)
        return tm, tm
    num_m = 2 * (-(-M // (2 * tm_target)))          # even tile count
    tm = _round_up(-(-M // num_m), 8)
    return tm, tm * num_m


# -----------------------------------------------------------------------------
# Fused kernel.
# Grid: (M tiles [parallel], N tiles over padded vocab+value columns,
#        K tiles over the H contraction).
#   n == 0 pass, every k:  h[:, k-slab] = x @ W[:, k-slab] + (x@A) @ B[:, k-slab]
#   every (n, k):          out[m, n]   += h[:, k-slab] @ W_out[k-slab, n]
# h lives in VMEM scratch and never round-trips HBM.
# -----------------------------------------------------------------------------
def _fused_lora_lm_kernel(x_ref, w_ref, a_ref, b_ref, wout_ref,
                          out_ref, h_ref, xa_ref):
    n = pl.program_id(1)
    k = pl.program_id(2)
    tk = w_ref.shape[1]

    # ---- Stage 0 (once per M-tile): cache xa = x @ A in bf16 scratch. -------
    @pl.when(jnp.logical_and(n == 0, k == 0))
    def _():
        xa_ref[...] = jnp.dot(
            x_ref[...], a_ref[...],
            preferred_element_type=jnp.float32).astype(xa_ref.dtype)

    off = pl.multiple_of(k * tk, 128)

    # ---- Stage 1 (spread over K on the first N pass): k-th H-slab of h. -----
    @pl.when(n == 0)
    def _():
        base = jnp.dot(x_ref[...], w_ref[...],
                       preferred_element_type=jnp.float32)
        lora = jnp.dot(xa_ref[...], b_ref[...],      # B pre-scaled by alpha/r
                       preferred_element_type=jnp.float32)
        h_ref[:, pl.ds(off, tk)] = (base + lora).astype(h_ref.dtype)

    # ---- Stage 2: K-tiled head projection, accumulated directly into the ----
    # ---- f32 output block (resident across k, written back on (m,n) change).
    @pl.when(k == 0)
    def _():
        out_ref[...] = jnp.zeros_like(out_ref)

    out_ref[...] += jnp.dot(h_ref[:, pl.ds(off, tk)], wout_ref[...],
                            preferred_element_type=jnp.float32)


def fused_lora_lm_head(x, w, a_pad, b_pad_scaled, w_out, *, tm, tn, tk):
    """x:[Mp,H] bf16, w:[H,H] bf16, a_pad:[H,rp] bf16, b_pad_scaled:[rp,H] bf16,
    w_out:[H,Vp] bf16  ->  out:[Mp,Vp] f32
    (Vp = lm_head vocab + value column, padded to a multiple of tn)."""
    Mp, H = x.shape
    r_pad = a_pad.shape[1]
    Vp = w_out.shape[1]
    assert Mp % tm == 0, (Mp, tm)
    assert Vp % tn == 0, (Vp, tn)
    assert H % tk == 0, (H, tk)
    num_m, num_n, num_k = Mp // tm, Vp // tn, H // tk

    def col_tile_map(m, n, k):
        # W / B column tiles are only read while n == 0 (stage 1); park on the
        # last tile for n > 0 so they stream from HBM once per M-tile, not per N.
        return (0, jnp.where(n == 0, k, num_k - 1))

    grid_spec = pltpu.PrefetchScalarGridSpec(
        num_scalar_prefetch=0,
        grid=(num_m, num_n, num_k),
        in_specs=[
            pl.BlockSpec((tm, H), lambda m, n, k: (m, 0)),      # x row slab / M-tile
            pl.BlockSpec((H, tk), col_tile_map),                # W column tile
            pl.BlockSpec((H, r_pad), lambda m, n, k: (0, 0)),   # A (small, resident)
            pl.BlockSpec((r_pad, tk), col_tile_map),            # B*alpha/r column tile
            pl.BlockSpec((tk, tn), lambda m, n, k: (k, n)),     # W_out tile
        ],
        out_specs=pl.BlockSpec((tm, tn), lambda m, n, k: (m, n)),
        scratch_shapes=[
            pltpu.VMEM((tm, H), jnp.bfloat16),       # h (never round-trips HBM)
            pltpu.VMEM((tm, r_pad), jnp.bfloat16),   # xa = x @ A, cached per M-tile
        ],
    )

    cost = pl.CostEstimate(
        flops=2 * Mp * H * (H + 2 * r_pad + Vp),
        transcendentals=0,
        bytes_accessed=(2 * (Mp * H + H * r_pad)
                        + 2 * num_m * (H * H + r_pad * H + H * Vp)
                        + 4 * Mp * Vp),
    )

    return pl.pallas_call(
        _fused_lora_lm_kernel,
        out_shape=jax.ShapeDtypeStruct((Mp, Vp), jnp.float32),
        grid_spec=grid_spec,
        compiler_params=pltpu.CompilerParams(
            # M-tiles shard across TensorCores (v7x megacore); N/K stay
            # "arbitrary" because h is materialized on the n==0 pass and K is
            # the accumulation axis of the resident output block.
            dimension_semantics=("parallel", "arbitrary", "arbitrary"),
            vmem_limit_bytes=56 * 1024 * 1024,   # fits v7x's 64 MiB ceiling
        ),
        cost_estimate=cost,
    )(x, w, a_pad, b_pad_scaled, w_out)


# -----------------------------------------------------------------------------
# JAX re-implementation of the wrapper's forward-path semantics.
# -----------------------------------------------------------------------------
class MultiAdapterWrapper:
    """Switch LoRA adapters, then run causal-LM-with-value-head forward."""

    def __init__(self, *, hidden, vocab, rank, lora_alpha, adapter_names, key):
        self.hidden = hidden
        self.vocab = vocab
        self.rank = rank
        k_emb, k_w, k_lm, k_vh, k_bv, k_ad = jax.random.split(key, 6)

        bf16 = jnp.bfloat16
        # Base ("pretrained") weights, stored bf16 for the MXU fast path.
        self.embed = (jax.random.normal(k_emb, (vocab, hidden), jnp.float32)
                      * 0.02).astype(bf16)
        self.w_base = (jax.random.normal(k_w, (hidden, hidden), jnp.float32)
                       * 0.02).astype(bf16)
        self.w_lm = (jax.random.normal(k_lm, (hidden, vocab), jnp.float32)
                     * 0.02).astype(bf16)
        self.w_v = (jax.random.normal(k_vh, (hidden, 1), jnp.float32)
                    * 0.02).astype(bf16)
        self.b_v = jax.random.normal(k_bv, (), jnp.float32) * 0.02

        # Tile selection (vocab / hidden are static per model).
        v_min = _round_up(vocab + 1, 128)
        self.tn = v_min if v_min <= 1024 else 512   # single N tile for small vocab
        self.vocab_padded = _round_up(vocab + 1, self.tn)
        self.tk = _largest_col_tile(hidden, 512)

        # Fold value head into lm_head: one lane-dense output slab of width Vp.
        # Column `vocab` is the value head; the rest is zero padding.
        pad_cols = self.vocab_padded - (vocab + 1)
        self.w_out = jnp.concatenate(
            [self.w_lm, self.w_v, jnp.zeros((hidden, pad_cols), bf16)], axis=1)

        # Per-adapter LoRA weights: rank zero-padded to 128 lanes, B pre-scaled
        # by alpha/r on the host (drops the in-kernel scalar multiply).
        self.rank_padded = _round_up(max(rank, 1), 128)
        scale = lora_alpha / rank
        self._adapters = {}
        for i, name in enumerate(adapter_names):
            ka, kb = jax.random.split(jax.random.fold_in(k_ad, i))
            a = jax.random.normal(ka, (hidden, rank), jnp.float32) * 0.05
            b = jax.random.normal(kb, (rank, hidden), jnp.float32) * 0.05
            a_pad = jnp.zeros((hidden, self.rank_padded), jnp.float32
                              ).at[:, :rank].set(a).astype(bf16)
            b_pad = jnp.zeros((self.rank_padded, hidden), jnp.float32
                              ).at[:rank, :].set(scale * b).astype(bf16)
            self._adapters[name] = (a_pad, b_pad)
        # TODO(synk): optional peft-merge fast path (W' = W + A @ B_scaled on
        # adapter switch) would drop the LoRA matmuls from the hot path.

        self._adapter_name = adapter_names[0]
        self._active_adapter = adapter_names[0]
        self._is_peft_model = True

    # --- adapter bookkeeping (mirrors peft set_adapter semantics) ------------
    def _activate(self):
        self._active_adapter = self._adapter_name
        return self

    def set_default_adapter(self, name):
        self._adapter_name = name

    @property
    def active_adapter(self):
        return self._active_adapter

    @property
    def is_peft_model(self):
        return self._is_peft_model

    # --- forward --------------------------------------------------------------
    def __call__(self, input_ids):
        """input_ids: [batch, seq] int32 -> (lm_logits [B,S,V], values [B,S])."""
        self._activate()
        a_pad, b_pad = self._adapters[self._active_adapter]
        batch, seq = input_ids.shape
        M = batch * seq

        # Glue: embedding lookup + flatten tokens, token-major [M, H] bf16.
        x = jnp.take(self.embed, input_ids.reshape(-1), axis=0)

        # Pad the token axis so tm is capped and tiles divide evenly
        # (prevents the h scratch / x block from scaling with arbitrary M).
        tm, Mp = _choose_tm(M)
        if Mp != M:
            x = jnp.pad(x, ((0, Mp - M), (0, 0)))

        # Hot path: fused LoRA linear + lm_head + value head (single Pallas call).
        out = fused_lora_lm_head(x, self.w_base, a_pad, b_pad, self.w_out,
                                 tm=tm, tn=self.tn, tk=self.tk)
        out = out[:M]

        logits = out[:, :self.vocab].reshape(batch, seq, self.vocab)
        values = (out[:, self.vocab] + self.b_v).reshape(batch, seq)
        return logits, values

    # TODO(synk): autoregressive generate() with KV cache and the
    # disable_adapter() context manager are out of scope for this kernel.


if __name__ == "__main__":
    BATCH, SEQ, HIDDEN, VOCAB, RANK = 2, 64, 256, 512, 8

    key = jax.random.PRNGKey(0)
    k_model, k_ids = jax.random.split(key)

    model = MultiAdapterWrapper(
        hidden=HIDDEN, vocab=VOCAB, rank=RANK, lora_alpha=16.0,
        adapter_names=("policy", "value"), key=k_model)

    input_ids = jax.random.randint(k_ids, (BATCH, SEQ), 0, VOCAB, jnp.int32)

    # Run with the default adapter, then switch adapters (the whole point of
    # the wrapper) and run again.
    logits_a, values_a = model(input_ids)
    model.set_default_adapter("value")
    logits_b, values_b = model(input_ids)

    jax.block_until_ready((logits_a, values_a, logits_b, values_b))

    assert logits_a.shape == (BATCH, SEQ, VOCAB)
    assert values_a.shape == (BATCH, SEQ)

    # Cross-check against a pure-JAX reference using the same bf16 operands /
    # f32 accumulation numerics as the MXU path.
    def ref_forward(ids, a_pad, b_pad_scaled):
        x = jnp.take(model.embed, ids.reshape(-1), axis=0)
        base = jnp.dot(x, model.w_base, preferred_element_type=jnp.float32)
        xa = jnp.dot(x, a_pad, preferred_element_type=jnp.float32)
        lora = jnp.dot(xa.astype(jnp.bfloat16), b_pad_scaled,
                       preferred_element_type=jnp.float32)
        h = (base + lora).astype(jnp.bfloat16)
        lg = jnp.dot(h, model.w_lm, preferred_element_type=jnp.float32)
        vv = jnp.dot(h, model.w_v, preferred_element_type=jnp.float32)[:, 0]
        return (lg.reshape(BATCH, SEQ, VOCAB),
                (vv + model.b_v).reshape(BATCH, SEQ))

    a0, b0 = model._adapters["policy"]
    ref_logits, ref_values = ref_forward(input_ids, a0, b0)
    assert jnp.allclose(logits_a, ref_logits, atol=1e-4, rtol=1e-3)
    assert jnp.allclose(values_a, ref_values, atol=1e-4, rtol=1e-3)
    # Adapter switch must change the output.
    assert not jnp.allclose(logits_a, logits_b)

    print("KERNEL_OK")
</pallas_src>

<mosaic_0001>
module attributes {stable_mosaic.version = 11 : i64} {
  func.func @_fused_lora_lm_kernel(%arg0: i32, %arg1: i32, %arg2: i32, %arg3: memref<128x256xbf16, #tpu.memory_space<vmem>>, %arg4: memref<256x256xbf16, #tpu.memory_space<vmem>>, %arg5: memref<256x128xbf16, #tpu.memory_space<vmem>>, %arg6: memref<128x256xbf16, #tpu.memory_space<vmem>>, %arg7: memref<256x640xbf16, #tpu.memory_space<vmem>>, %arg8: memref<128x640xf32, #tpu.memory_space<vmem>>, %arg9: memref<128x256xbf16, #tpu.memory_space<vmem>>, %arg10: memref<128x128xbf16, #tpu.memory_space<vmem>>) attributes {dimension_semantics = [#tpu.dimension_semantics<parallel>, #tpu.dimension_semantics<arbitrary>, #tpu.dimension_semantics<arbitrary>], iteration_bounds = array<i64: 1, 1, 1>, scalar_prefetch = 0 : i64, scratch_operands = 2 : i64, tpu.core_type = #tpu.core_type<tc>, window_params = [{transform_indices = @transform_0, window_bounds = array<i64: 128, 256>}, {transform_indices = @transform_1, window_bounds = array<i64: 256, 256>}, {pipeline_mode = #tpu.pipeline_mode<synchronous>, transform_indices = @transform_2, window_bounds = array<i64: 256, 128>}, {transform_indices = @transform_3, window_bounds = array<i64: 128, 256>}, {transform_indices = @transform_4, window_bounds = array<i64: 256, 640>}, {transform_indices = @transform_5, window_bounds = array<i64: 128, 640>}]} {
    %c0_i32 = arith.constant 0 : i32
    %0 = arith.cmpi eq, %arg1, %c0_i32 : i32
    %c0_i32_0 = arith.constant 0 : i32
    %1 = arith.cmpi eq, %arg2, %c0_i32_0 : i32
    %2 = arith.andi %0, %1 : i1
    %3 = arith.extui %2 : i1 to i32
    %c0_i32_1 = arith.constant 0 : i32
    %4 = arith.cmpi ne, %3, %c0_i32_1 : i32
    scf.if %4 {
      %c0_12 = arith.constant 0 : index
      %c0_13 = arith.constant 0 : index
      %20 = vector.load %arg3[%c0_12, %c0_13] : memref<128x256xbf16, #tpu.memory_space<vmem>>, vector<128x256xbf16>
      %c0_14 = arith.constant 0 : index
      %c0_15 = arith.constant 0 : index
      %21 = vector.load %arg5[%c0_14, %c0_15] : memref<256x128xbf16, #tpu.memory_space<vmem>>, vector<256x128xbf16>
      %cst_16 = arith.constant dense<0.000000e+00> : vector<128x128xf32>
      %22 = tpu.matmul %20, %21, %cst_16 {dimension_numbers = #tpu.dot_dimension_numbers<[1], [0], [0], [1], [0, 0, 1, 1], [], []>} : vector<128x256xbf16>, vector<256x128xbf16>, vector<128x128xf32> -> vector<128x128xf32>
      %23 = arith.truncf %22 : vector<128x128xf32> to vector<128x128xbf16>
      %c0_17 = arith.constant 0 : index
      %c0_18 = arith.constant 0 : index
      %24 = vector.load %arg10[%c0_17, %c0_18] : memref<128x128xbf16, #tpu.memory_space<vmem>>, vector<128x128xbf16>
      tpu.vector_store %arg10[%c0_17, %c0_18], %23 {strides = array<i32>} : memref<128x128xbf16, #tpu.memory_space<vmem>>, vector<128x128xbf16>,
    } else {
    }
    %c256_i32 = arith.constant 256 : i32
    %5 = arith.muli %arg2, %c256_i32 : i32
    %6 = tpu.assume_multiple %5, 128 : i32
    %c0_i32_2 = arith.constant 0 : i32
    %7 = arith.cmpi eq, %arg1, %c0_i32_2 : i32
    %8 = arith.extui %7 : i1 to i32
    %c0_i32_3 = arith.constant 0 : i32
    %9 = arith.cmpi ne, %8, %c0_i32_3 : i32
    scf.if %9 {
      %c0_12 = arith.constant 0 : index
      %c0_13 = arith.constant 0 : index
      %20 = vector.load %arg3[%c0_12, %c0_13] : memref<128x256xbf16, #tpu.memory_space<vmem>>, vector<128x256xbf16>
      %c0_14 = arith.constant 0 : index
      %c0_15 = arith.constant 0 : index
      %21 = vector.load %arg4[%c0_14, %c0_15] : memref<256x256xbf16, #tpu.memory_space<vmem>>, vector<256x256xbf16>
      %cst_16 = arith.constant dense<0.000000e+00> : vector<128x256xf32>
      %22 = tpu.matmul %20, %21, %cst_16 {dimension_numbers = #tpu.dot_dimension_numbers<[1], [0], [0], [1], [0, 0, 1, 1], [], []>} : vector<128x256xbf16>, vector<256x256xbf16>, vector<128x256xf32> -> vector<128x256xf32>
      %c0_17 = arith.constant 0 : index
      %c0_18 = arith.constant 0 : index
      %23 = vector.load %arg10[%c0_17, %c0_18] : memref<128x128xbf16, #tpu.memory_space<vmem>>, vector<128x128xbf16>
      %c0_19 = arith.constant 0 : index
      %c0_20 = arith.constant 0 : index
      %24 = vector.load %arg6[%c0_19, %c0_20] : memref<128x256xbf16, #tpu.memory_space<vmem>>, vector<128x256xbf16>
      %cst_21 = arith.constant dense<0.000000e+00> : vector<128x256xf32>
      %25 = tpu.matmul %23, %24, %cst_21 {dimension_numbers = #tpu.dot_dimension_numbers<[1], [0], [0], [1], [0, 0, 1, 1], [], []>} : vector<128x128xbf16>, vector<128x256xbf16>, vector<128x256xf32> -> vector<128x256xf32>
      %26 = arith.addf %22, %25 : vector<128x256xf32>
      %27 = arith.truncf %26 : vector<128x256xf32> to vector<128x256xbf16>
      %c0_22 = arith.constant 0 : index
      %28 = arith.index_cast %6 : i32 to index
      %29 = vector.load %arg9[%c0_22, %28] : memref<128x256xbf16, #tpu.memory_space<vmem>>, vector<128x256xbf16>
      tpu.vector_store %arg9[%c0_22, %28], %27 {strides = array<i32>} : memref<128x256xbf16, #tpu.memory_space<vmem>>, vector<128x256xbf16>,
    } else {
    }
    %c0_i32_4 = arith.constant 0 : i32
    %10 = arith.cmpi eq, %arg2, %c0_i32_4 : i32
    %11 = arith.extui %10 : i1 to i32
    %c0_i32_5 = arith.constant 0 : i32
    %12 = arith.cmpi ne, %11, %c0_i32_5 : i32
    scf.if %12 {
      %cst_12 = arith.constant 0.000000e+00 : f32
      %20 = vector.broadcast %cst_12 : f32 to vector<128x640xf32>
      %c0_13 = arith.constant 0 : index
      %c0_14 = arith.constant 0 : index
      %21 = vector.load %arg8[%c0_13, %c0_14] : memref<128x640xf32, #tpu.memory_space<vmem>>, vector<128x640xf32>
      tpu.vector_store %arg8[%c0_13, %c0_14], %20 {strides = array<i32>} : memref<128x640xf32, #tpu.memory_space<vmem>>, vector<128x640xf32>,
    } else {
    }
    %c0 = arith.constant 0 : index
    %c0_6 = arith.constant 0 : index
    %13 = vector.load %arg8[%c0, %c0_6] : memref<128x640xf32, #tpu.memory_space<vmem>>, vector<128x640xf32>
    %c0_7 = arith.constant 0 : index
    %14 = arith.index_cast %6 : i32 to index
    %15 = vector.load %arg9[%c0_7, %14] : memref<128x256xbf16, #tpu.memory_space<vmem>>, vector<128x256xbf16>
    %c0_8 = arith.constant 0 : index
    %c0_9 = arith.constant 0 : index
    %16 = vector.load %arg7[%c0_8, %c0_9] : memref<256x640xbf16, #tpu.memory_space<vmem>>, vector<256x640xbf16>
    %cst = arith.constant dense<0.000000e+00> : vector<128x640xf32>
    %17 = tpu.matmul %15, %16, %cst {dimension_numbers = #tpu.dot_dimension_numbers<[1], [0], [0], [1], [0, 0, 1, 1], [], []>} : vector<128x256xbf16>, vector<256x640xbf16>, vector<128x640xf32> -> vector<128x640xf32>
    %18 = arith.addf %13, %17 : vector<128x640xf32>
    %c0_10 = arith.constant 0 : index
    %c0_11 = arith.constant 0 : index
    %19 = vector.load %arg8[%c0_10, %c0_11] : memref<128x640xf32, #tpu.memory_space<vmem>>, vector<128x640xf32>
    tpu.vector_store %arg8[%c0_10, %c0_11], %18 {strides = array<i32>} : memref<128x640xf32, #tpu.memory_space<vmem>>, vector<128x640xf32>,
    return
  }
  func.func @transform_0(%arg0: i32, %arg1: i32, %arg2: i32) -> (i32, i32) {
    %c0_i32 = arith.constant 0 : i32
    %c0_i32_0 = arith.constant 0 : i32
    return %arg0, %c0_i32 : i32, i32
  }
  func.func @transform_1(%arg0: i32, %arg1: i32, %arg2: i32) -> (i32, i32) {
    %c0_i32 = arith.constant 0 : i32
    %0 = arith.cmpi eq, %arg1, %c0_i32 : i32
    %c0_i32_0 = arith.constant 0 : i32
    %1 = arith.select %0, %arg2, %c0_i32_0 : i32
    %c0_i32_1 = arith.constant 0 : i32
    %c0_i32_2 = arith.constant 0 : i32
    return %c0_i32_1, %1 : i32, i32
  }
  func.func @transform_2(%arg0: i32, %arg1: i32, %arg2: i32) -> (i32, i32) {
    %c0_i32 = arith.constant 0 : i32
    %c0_i32_0 = arith.constant 0 : i32
    %c0_i32_1 = arith.constant 0 : i32
    return %c0_i32, %c0_i32_0 : i32, i32
  }
  func.func @transform_3(%arg0: i32, %arg1: i32, %arg2: i32) -> (i32, i32) {
    %c0_i32 = arith.constant 0 : i32
    %0 = arith.cmpi eq, %arg1, %c0_i32 : i32
    %c0_i32_0 = arith.constant 0 : i32
    %1 = arith.select %0, %arg2, %c0_i32_0 : i32
    %c0_i32_1 = arith.constant 0 : i32
    %c0_i32_2 = arith.constant 0 : i32
    return %c0_i32_1, %1 : i32, i32
  }
  func.func @transform_4(%arg0: i32, %arg1: i32, %arg2: i32) -> (i32, i32) {
    %c0_i32 = arith.constant 0 : i32
    return %arg2, %arg1 : i32, i32
  }
  func.func @transform_5(%arg0: i32, %arg1: i32, %arg2: i32) -> (i32, i32) {
    %c0_i32 = arith.constant 0 : i32
    return %arg0, %arg1 : i32, i32
  }
}

</mosaic_0001>

<llo_original>
// kernel: tpu_custom_call.1
$region0: #{tpu_custom_call.1}
  #allocation0 [shape = 'u32[]', space=smem, size = 0x4, offset = 0x4, fixed_abs, tag = 'smem constant byte address 0x4 - core index']
  #allocation1 [shape = 'u32[144,128]{1,0:T(1,128)}', space=vmem, size = 0x12000, scoped, tag = 'internal scratch']
  #allocation2 [shape = 'bf16[128,256]{1,0:T(8,128)(2,1)}', space=vmem, size = 0x10000, scoped, tag = 'scratch operand']
  #allocation3 [shape = 'bf16[128,128]{1,0:T(8,128)(2,1)}', space=vmem, size = 0x8000, scoped, tag = 'scratch operand']
  %s0 = inlined_call_operand.hbm [shape: bf16[128,256], index: 0, kind: input, shape index: {}]
  %s1 = inlined_call_operand.hbm [shape: bf16[256,256], index: 1, kind: input, shape index: {}]
  %s2 = inlined_call_operand.hbm [shape: bf16[256,128], index: 2, kind: input, shape index: {}]
  %s3 = inlined_call_operand.hbm [shape: bf16[128,256], index: 3, kind: input, shape index: {}]
  %s4 = inlined_call_operand.hbm [shape: bf16[256,640], index: 4, kind: input, shape index: {}]
  %s5 = inlined_call_operand.hbm [shape: f32[128,640], index: 5, kind: output, shape index: {}]
  %s6 = sld [smem:[#allocation0]]
  $region62: #{tpu_custom_call.1} parent=0
    _
  %s8 = ssub.s32 1, %s6
  %s9 = scalar_select 0, %s8, %s6
  $region1: #{tpu_custom_call.1} parent=0
    #allocation4 [shape = 'u8[65536]{0}', space=vmem, size = 0x10000, scoped, tag = 'input window, operand 0, single buffered']
    #allocation5 [shape = 's32[1]{0}', space=sflag, size = 0x4, scoped, tag = 'scoped memory for tpu_custom_call.1']
    #allocation6 [shape = 's32[1]{0}', space=sflag, size = 0x4, scoped, tag = 'scoped memory for tpu_custom_call.1']
    #allocation7 [shape = 'u8[131072]{0}', space=vmem, size = 0x20000, scoped, tag = 'input window, operand 1, single buffered']
    #allocation8 [shape = 's32[1]{0}', space=sflag, size = 0x4, scoped, tag = 'scoped memory for tpu_custom_call.1']
    #allocation9 [shape = 'u8[65536]{0}', space=vmem, size = 0x10000, scoped, tag = 'input window, operand 2, single buffered']
    #allocation10 [shape = 'u8[65536]{0}', space=vmem, size = 0x10000, scoped, tag = 'input window, operand 3, single buffered']
    #allocation11 [shape = 's32[1]{0}', space=sflag, size = 0x4, scoped, tag = 'scoped memory for tpu_custom_call.1']
    #allocation12 [shape = 'u8[327680]{0}', space=vmem, size = 0x50000, scoped, tag = 'input window, operand 4, single buffered']
    #allocation13 [shape = 'u8[327680]{0}', space=vmem, size = 0x50000, scoped, tag = 'output window, operand 0, single buffered']
    %10 = vsyncpa [#allocation5], 0
    %11 = vsyncpa [#allocation8], 0
    %12 = vsyncpa [#allocation11], 0
    %13 = vsyncpa [#allocation6], 0
    // Predicated region
    $region2: #{tpu_custom_call.1} parent=1 // pred_check
      _
    $region3: #{tpu_custom_call.1} parent=1 // pred_check_branch
      %15 = sbr.rel (0) target = $region5
    $region4: #{tpu_custom_call.1} parent=1 // pred_region
      %s17 = ssub.s32 2048, 2048
      %18 = vsyncadd [#allocation5], %s17
      %s19 = sshll.u32 [#allocation4], 4
      %s20 = int_to_ptr.vmem [resolvable:$true] %s19
      %25 = dma.hbm_to_vmem [thread:$0]  %s0, 2048, %s20, [#allocation5], 128, 128, 8
    $region5: #{tpu_custom_call.1} parent=1 // pred_fallthru
      _
    // Predicated region
    $region6: #{tpu_custom_call.1} parent=1 // pred_check
      _
    $region7: #{tpu_custom_call.1} parent=1 // pred_check_branch
      %27 = sbr.rel (0) target = $region9
    $region8: #{tpu_custom_call.1} parent=1 // pred_region
      %p28 = scmp.eq.s32.totalorder 0, 0
      %s29 = scalar_select %p28, 0, 0
      %s30 = smul.u32 2, %s29
      %s32 = ssub.s32 4096, 4096
      %33 = vsyncadd [#allocation8], %s32
      %s34 = smul.addr %s30, 64
      %s35 = scalar_lea.hbm %s1, %s34
      %s36 = sshll.u32 [#allocation7], 4
      %s37 = int_to_ptr.vmem [resolvable:$true] %s36
      %42 = dma.hbm_to_vmem [thread:$0]  %s35, 4096, %s37, [#allocation8], 128, 128, 8
    $region9: #{tpu_custom_call.1} parent=1 // pred_fallthru
      _
    // Predicated region
    $region10: #{tpu_custom_call.1} parent=1 // pred_check
      _
    $region11: #{tpu_custom_call.1} parent=1 // pred_check_branch
      %44 = sbr.rel (0) target = $region13
    $region12: #{tpu_custom_call.1} parent=1 // pred_region
      %s46 = ssub.s32 2048, 2048
      %47 = vsyncadd [#allocation8], %s46
      %s48 = sshll.u32 [#allocation9], 4
      %s49 = int_to_ptr.vmem [resolvable:$true] %s48
      %54 = dma.hbm_to_vmem [thread:$0]  %s2, 2048, %s49, [#allocation8], 64, 64, 4
    $region13: #{tpu_custom_call.1} parent=1 // pred_fallthru
      _
    // Predicated region
    $region14: #{tpu_custom_call.1} parent=1 // pred_check
      _
    $region15: #{tpu_custom_call.1} parent=1 // pred_check_branch
      %56 = sbr.rel (0) target = $region17
    $region16: #{tpu_custom_call.1} parent=1 // pred_region
      %p57 = scmp.eq.s32.totalorder 0, 0
      %s58 = scalar_select %p57, 0, 0
      %s59 = smul.u32 2, %s58
      %s61 = ssub.s32 2048, 2048
      %62 = vsyncadd [#allocation11], %s61
      %s63 = smul.addr %s59, 64
      %s64 = scalar_lea.hbm %s3, %s63
      %s65 = sshll.u32 [#allocation10], 4
      %s66 = int_to_ptr.vmem [resolvable:$true] %s65
      %71 = dma.hbm_to_vmem [thread:$0]  %s64, 2048, %s66, [#allocation11], 128, 128, 8
    $region17: #{tpu_custom_call.1} parent=1 // pred_fallthru
      _
    // Predicated region
    $region18: #{tpu_custom_call.1} parent=1 // pred_check
      _
    $region19: #{tpu_custom_call.1} parent=1 // pred_check_branch
      %73 = sbr.rel (0) target = $region21
    $region20: #{tpu_custom_call.1} parent=1 // pred_region
      %s75 = ssub.s32 10240, 10240
      %76 = vsyncadd [#allocation11], %s75
      %s77 = sshll.u32 [#allocation12], 4
      %s78 = int_to_ptr.vmem [resolvable:$true] %s77
      %83 = dma.hbm_to_vmem [thread:$0]  %s4, 10240, %s78, [#allocation11], 320, 320, 20
    $region21: #{tpu_custom_call.1} parent=1 // pred_fallthru
      _
    // Predicated region
    $region22: #{tpu_custom_call.1} parent=1 // pred_check
      _
    $region23: #{tpu_custom_call.1} parent=1 // pred_check_branch
      %85 = sbr.rel (0) target = $region25
    $region24: #{tpu_custom_call.1} parent=1 // pred_region
      %86 = dma.done [#allocation5], 2048
    $region25: #{tpu_custom_call.1} parent=1 // pred_fallthru
      _
    // Predicated region
    $region26: #{tpu_custom_call.1} parent=1 // pred_check
      _
    $region27: #{tpu_custom_call.1} parent=1 // pred_check_branch
      %88 = sbr.rel (0) target = $region29
    $region28: #{tpu_custom_call.1} parent=1 // pred_region
      %89 = dma.done [#allocation8], 4096
    $region29: #{tpu_custom_call.1} parent=1 // pred_fallthru
      _
    // Predicated region
    $region30: #{tpu_custom_call.1} parent=1 // pred_check
      _
    $region31: #{tpu_custom_call.1} parent=1 // pred_check_branch
      %91 = sbr.rel (0) target = $region33
    $region32: #{tpu_custom_call.1} parent=1 // pred_region
      %92 = dma.done [#allocation8], 2048
    $region33: #{tpu_custom_call.1} parent=1 // pred_fallthru
      _
    // Predicated region
    $region34: #{tpu_custom_call.1} parent=1 // pred_check
      _
    $region35: #{tpu_custom_call.1} parent=1 // pred_check_branch
      %94 = sbr.rel (0) target = $region37
    $region36: #{tpu_custom_call.1} parent=1 // pred_region
      %95 = dma.done [#allocation11], 2048
    $region37: #{tpu_custom_call.1} parent=1 // pred_fallthru
      _
    // Predicated region
    $region38: #{tpu_custom_call.1} parent=1 // pred_check
      _
    $region39: #{tpu_custom_call.1} parent=1 // pred_check_branch
      %97 = sbr.rel (0) target = $region41
    $region40: #{tpu_custom_call.1} parent=1 // pred_region
      %98 = dma.done [#allocation11], 10240
    $region41: #{tpu_custom_call.1} parent=1 // pred_fallthru
      _
    %p99 = scmp.eq.s32.totalorder 0, 0
    %s100 = scalar_select %p99, 0, 0
    %s101 = smul.u32 2, %s100
    %p102 = scmp.eq.s32.totalorder 0, 0
    %s103 = scalar_select %p102, 0, 0
    %s104 = smul.u32 2, %s103
    %p106 = scmp.eq.s32.totalorder 0, 0
    %p107 = scmp.eq.s32.totalorder 0, 0
    %p108 = pnand %p106, %p107
    %p109 = pneg %p108
    // Predicated region
    $region42: #{tpu_custom_call.1} parent=1 // pred_check
      _
    $region43: #{tpu_custom_call.1} parent=1 // pred_check_branch
      %111 = sbr.rel (%p108) target = $region45
    $region44: #{tpu_custom_call.1} parent=1 // pred_region
      %v112 = vld [vmem:[#allocation4] sm:$0xff]
      %v113 = vld [vmem:[#allocation4 + $0x8] sm:$0xff]
      %v114 = vld [vmem:[#allocation4 + $0x10] sm:$0xff]
      %v115 = vld [vmem:[#allocation4 + $0x18] sm:$0xff]
      %v116 = vld [vmem:[#allocation4 + $0x20] sm:$0xff]
      %v117 = vld [vmem:[#allocation4 + $0x28] sm:$0xff]
      %v118 = vld [vmem:[#allocation4 + $0x30] sm:$0xff]
      %v119 = vld [vmem:[#allocation4 + $0x38] sm:$0xff]
      %v120 = vld [vmem:[#allocation4 + $0x40] sm:$0xff]
      %v121 = vld [vmem:[#allocation4 + $0x48] sm:$0xff]
      %v122 = vld [vmem:[#allocation4 + $0x50] sm:$0xff]
      %v123 = vld [vmem:[#allocation4 + $0x58] sm:$0xff]
      %v124 = vld [vmem:[#allocation4 + $0x60] sm:$0xff]
      %v125 = vld [vmem:[#allocation4 + $0x68] sm:$0xff]
      %v126 = vld [vmem:[#allocation4 + $0x70] sm:$0xff]
      %v127 = vld [vmem:[#allocation4 + $0x78] sm:$0xff]
      %v128 = vld [vmem:[#allocation9] sm:$0xf]
      %v129 = vld [vmem:[#allocation9 + $0x4] sm:$0xf]
      %v130 = vld [vmem:[#allocation9 + $0x8] sm:$0xf]
      %v131 = vld [vmem:[#allocation9 + $0xc] sm:$0xf]
      %v132 = vld [vmem:[#allocation9 + $0x10] sm:$0xf]
      %v133 = vld [vmem:[#allocation9 + $0x14] sm:$0xf]
      %v134 = vld [vmem:[#allocation9 + $0x18] sm:$0xf]
      %v135 = vld [vmem:[#allocation9 + $0x1c] sm:$0xf]
      %v136 = vld [vmem:[#allocation9 + $0x20] sm:$0xf]
      %v137 = vld [vmem:[#allocation9 + $0x24] sm:$0xf]
      %v138 = vld [vmem:[#allocation9 + $0x28] sm:$0xf]
      %v139 = vld [vmem:[#allocation9 + $0x2c] sm:$0xf]
      %v140 = vld [vmem:[#allocation9 + $0x30] sm:$0xf]
      %v141 = vld [vmem:[#allocation9 + $0x34] sm:$0xf]
      %v142 = vld [vmem:[#allocation9 + $0x38] sm:$0xf]
      %v143 = vld [vmem:[#allocation9 + $0x3c] sm:$0xf]
      %v144 = vld [vmem:[#allocation9 + $0x40] sm:$0xf]
      %v145 = vld [vmem:[#allocation9 + $0x44] sm:$0xf]
      %v146 = vld [vmem:[#allocation9 + $0x48] sm:$0xf]
      %v147 = vld [vmem:[#allocation9 + $0x4c] sm:$0xf]
      %v148 = vld [vmem:[#allocation9 + $0x50] sm:$0xf]
      %v149 = vld [vmem:[#allocation9 + $0x54] sm:$0xf]
      %v150 = vld [vmem:[#allocation9 + $0x58] sm:$0xf]
      %v151 = vld [vmem:[#allocation9 + $0x5c] sm:$0xf]
      %v152 = vld [vmem:[#allocation9 + $0x60] sm:$0xf]
      %v153 = vld [vmem:[#allocation9 + $0x64] sm:$0xf]
      %v154 = vld [vmem:[#allocation9 + $0x68] sm:$0xf]
      %v155 = vld [vmem:[#allocation9 + $0x6c] sm:$0xf]
      %v156 = vld [vmem:[#allocation9 + $0x70] sm:$0xf]
      %v157 = vld [vmem:[#allocation9 + $0x74] sm:$0xf]
      %v158 = vld [vmem:[#allocation9 + $0x78] sm:$0xf]
      %v159 = vld [vmem:[#allocation9 + $0x7c] sm:$0xf]
      %v176 = vunpack.c.l.b16 %v112
      %v177 = vunpack.c.h.b16 %v112
      %v178 = vunpack.c.l.b16 %v113
      %v179 = vunpack.c.h.b16 %v113
      %v180 = vunpack.c.l.b16 %v114
      %v181 = vunpack.c.h.b16 %v114
      %v182 = vunpack.c.l.b16 %v115
      %v183 = vunpack.c.h.b16 %v115
      %v184 = vunpack.c.l.b16 %v116
      %v185 = vunpack.c.h.b16 %v116
      %v186 = vunpack.c.l.b16 %v117
      %v187 = vunpack.c.h.b16 %v117
      %v188 = vunpack.c.l.b16 %v118
      %v189 = vunpack.c.h.b16 %v118
      %v190 = vunpack.c.l.b16 %v119
      %v191 = vunpack.c.h.b16 %v119
      %v192 = vunpack.c.l.b16 %v120
      %v193 = vunpack.c.h.b16 %v120
      %v194 = vunpack.c.l.b16 %v121
      %v195 = vunpack.c.h.b16 %v121
      %v196 = vunpack.c.l.b16 %v122
      %v197 = vunpack.c.h.b16 %v122
      %v198 = vunpack.c.l.b16 %v123
      %v199 = vunpack.c.h.b16 %v123
      %v200 = vunpack.c.l.b16 %v124
      %v201 = vunpack.c.h.b16 %v124
      %v202 = vunpack.c.l.b16 %v125
      %v203 = vunpack.c.h.b16 %v125
      %v204 = vunpack.c.l.b16 %v126
      %v205 = vunpack.c.h.b16 %v126
      %v206 = vunpack.c.l.b16 %v127
      %v207 = vunpack.c.h.b16 %v127
      %v208 = vpack.c.b16 %v178, %v176
      %v209 = vpack.c.b16 %v179, %v177
      %v210 = vpack.c.b16 %v182, %v180
      %v211 = vpack.c.b16 %v183, %v181
      %v212 = vpack.c.b16 %v186, %v184
      %v213 = vpack.c.b16 %v187, %v185
      %v214 = vpack.c.b16 %v190, %v188
      %v215 = vpack.c.b16 %v191, %v189
      %v216 = vpack.c.b16 %v194, %v192
      %v217 = vpack.c.b16 %v195, %v193
      %v218 = vpack.c.b16 %v198, %v196
      %v219 = vpack.c.b16 %v199, %v197
      %v220 = vpack.c.b16 %v202, %v200
      %v221 = vpack.c.b16 %v203, %v201
      %v222 = vpack.c.b16 %v206, %v204
      %v223 = vpack.c.b16 %v207, %v205
      %v272 = vunpack.c.l.b16 %v128
      %v273 = vunpack.c.l.b16 %v129
      %v274 = vunpack.c.l.b16 %v130
      %v275 = vunpack.c.l.b16 %v131
      %v276 = vunpack.c.l.b16 %v132
      %v277 = vunpack.c.l.b16 %v133
      %v278 = vunpack.c.l.b16 %v134
      %v279 = vunpack.c.l.b16 %v135
      %v280 = vunpack.c.l.b16 %v136
      %v281 = vunpack.c.l.b16 %v137
      %v282 = vunpack.c.l.b16 %v138
      %v283 = vunpack.c.l.b16 %v139
      %v284 = vunpack.c.l.b16 %v140
      %v285 = vunpack.c.l.b16 %v141
      %v286 = vunpack.c.l.b16 %v142
      %v287 = vunpack.c.l.b16 %v143
      %v288 = vunpack.c.l.b16 %v144
      %v289 = vunpack.c.l.b16 %v145
      %v290 = vunpack.c.l.b16 %v146
      %v291 = vunpack.c.l.b16 %v147
      %v292 = vunpack.c.l.b16 %v148
      %v293 = vunpack.c.l.b16 %v149
      %v294 = vunpack.c.l.b16 %v150
      %v295 = vunpack.c.l.b16 %v151
      %v296 = vunpack.c.l.b16 %v152
      %v297 = vunpack.c.l.b16 %v153
      %v298 = vunpack.c.l.b16 %v154
      %v299 = vunpack.c.l.b16 %v155
      %v300 = vunpack.c.l.b16 %v156
      %v301 = vunpack.c.l.b16 %v157
      %v302 = vunpack.c.l.b16 %v158
      %v303 = vunpack.c.l.b16 %v159
      %v304 = vpack.c.b16 %v273, %v272
      %v305 = vpack.c.b16 %v275, %v274
      %v306 = vpack.c.b16 %v277, %v276
      %v307 = vpack.c.b16 %v279, %v278
      %v308 = vpack.c.b16 %v281, %v280
      %v309 = vpack.c.b16 %v283, %v282
      %v310 = vpack.c.b16 %v285, %v284
      %v311 = vpack.c.b16 %v287, %v286
      %v312 = vpack.c.b16 %v289, %v288
      %v313 = vpack.c.b16 %v291, %v290
      %v314 = vpack.c.b16 %v293, %v292
      %v315 = vpack.c.b16 %v295, %v294
      %v316 = vpack.c.b16 %v297, %v296
      %v317 = vpack.c.b16 %v299, %v298
      %v318 = vpack.c.b16 %v301, %v300
      %v319 = vpack.c.b16 %v303, %v302
      %336 = vmatprep.subr.bf16.mxu0 0
      %337 = vmatpush1.bf16.msra.mxu0 %v311
      %338 = vmatprep.subr.bf16.mxu0 0
      %339 = vmatpush1.bf16.msra.mxu0 %v310
      %340 = vmatprep.subr.bf16.mxu0 0
      %341 = vmatpush1.bf16.msra.mxu0 %v309
      %342 = vmatprep.subr.bf16.mxu0 0
      %343 = vmatpush1.bf16.msra.mxu0 %v308
      %344 = vmatprep.subr.bf16.mxu0 0
      %345 = vmatpush1.bf16.msra.mxu0 %v307
      %346 = vmatprep.subr.bf16.mxu0 0
      %347 = vmatpush1.bf16.msra.mxu0 %v306
      %348 = vmatprep.subr.bf16.mxu0 0
      %349 = vmatpush1.bf16.msra.mxu0 %v305
      %350 = vmatprep.subr.bf16.mxu0 0
      %351 = vmatpush1.bf16.msra.mxu0 %v304
      %352 = vmatprep.subr.bf16.mxu0 0
      %353 = vmatpush2.bf16.msra.mxu0 %v319
      %354 = vmatprep.subr.bf16.mxu0 0
      %355 = vmatpush2.bf16.msra.mxu0 %v318
      %356 = vmatprep.subr.bf16.mxu0 0
      %357 = vmatpush2.bf16.msra.mxu0 %v317
      %358 = vmatprep.subr.bf16.mxu0 0
      %359 = vmatpush2.bf16.msra.mxu0 %v316
      %360 = vmatprep.subr.bf16.mxu0 0
      %361 = vmatpush2.bf16.msra.mxu0 %v315
      %362 = vmatprep.subr.bf16.mxu0 0
      %363 = vmatpush2.bf16.msra.mxu0 %v314
      %364 = vmatprep.subr.bf16.mxu0 0
      %365 = vmatpush2.bf16.msra.mxu0 %v313
      %366 = vmatprep.subr.bf16.mxu0 0
      %367 = vmatpush2.bf16.msra.mxu0 %v312
      %368 = vmatprep.mubr.bf16.mxu0 %v209
      %369 = vmatmul.mubr.bf16.gmra.mxu0 %v208
      %v370 = vpop.f32.mrf.mxu0
      %v371 = vadd.f32 0.0, %v370
      %v372 = vpop.f32.mrf.mxu0
      %v373 = vpop.f32.mrf.mxu0
      %v374 = vadd.f32 0.0, %v373
      %v375 = vpop.f32.mrf.mxu0
      %376 = vmatprep.mubr.bf16.mxu0 %v211
      %377 = vmatmul.mubr.bf16.gmra.mxu0 %v210
      %v378 = vpop.f32.mrf.mxu0
      %v379 = vadd.f32 0.0, %v378
      %v380 = vpop.f32.mrf.mxu0
      %v381 = vpop.f32.mrf.mxu0
      %v382 = vadd.f32 0.0, %v381
      %v383 = vpop.f32.mrf.mxu0
      %384 = vmatprep.mubr.bf16.mxu0 %v213
      %385 = vmatmul.mubr.bf16.gmra.mxu0 %v212
      %v386 = vpop.f32.mrf.mxu0
      %v387 = vadd.f32 0.0, %v386
      %v388 = vpop.f32.mrf.mxu0
      %v389 = vpop.f32.mrf.mxu0
      %v390 = vadd.f32 0.0, %v389
      %v391 = vpop.f32.mrf.mxu0
      %392 = vmatprep.mubr.bf16.mxu0 %v215
      %393 = vmatmul.mubr.bf16.gmra.mxu0 %v214
      %v394 = vpop.f32.mrf.mxu0
      %v395 = vadd.f32 0.0, %v394
      %v396 = vpop.f32.mrf.mxu0
      %v397 = vpop.f32.mrf.mxu0
      %v398 = vadd.f32 0.0, %v397
      %v399 = vpop.f32.mrf.mxu0
      %400 = vmatprep.mubr.bf16.mxu0 %v217
      %401 = vmatmul.mubr.bf16.gmra.mxu0 %v216
      %v402 = vpop.f32.mrf.mxu0
      %v403 = vadd.f32 0.0, %v402
      %v404 = vpop.f32.mrf.mxu0
      %v405 = vpop.f32.mrf.mxu0
      %v406 = vadd.f32 0.0, %v405
      %v407 = vpop.f32.mrf.mxu0
      %408 = vmatprep.mubr.bf16.mxu0 %v219
      %409 = vmatmul.mubr.bf16.gmra.mxu0 %v218
      %v410 = vpop.f32.mrf.mxu0
      %v411 = vadd.f32 0.0, %v410
      %v412 = vpop.f32.mrf.mxu0
      %v413 = vpop.f32.mrf.mxu0
      %v414 = vadd.f32 0.0, %v413
      %v415 = vpop.f32.mrf.mxu0
      %416 = vmatprep.mubr.bf16.mxu0 %v221
      %417 = vmatmul.mubr.bf16.gmra.mxu0 %v220
      %v418 = vpop.f32.mrf.mxu0
      %v419 = vadd.f32 0.0, %v418
      %v420 = vpop.f32.mrf.mxu0
      %v421 = vpop.f32.mrf.mxu0
      %v422 = vadd.f32 0.0, %v421
      %v423 = vpop.f32.mrf.mxu0
      %424 = vmatprep.mubr.bf16.mxu0 %v223
      %425 = vmatmul.mubr.bf16.gmra.mxu0 %v222
      %v426 = vpop.f32.mrf.mxu0
      %v427 = vadd.f32 0.0, %v426
      %v428 = vpop.f32.mrf.mxu0
      %v429 = vpop.f32.mrf.mxu0
      %v430 = vadd.f32 0.0, %v429
      %v431 = vpop.f32.mrf.mxu0
      %432 = vdwg.mxu0
      %v433 = vpack.c.bf16 %v374, %v371
      %v434 = vpack.c.bf16 %v382, %v379
      %v435 = vpack.c.bf16 %v390, %v387
      %v436 = vpack.c.bf16 %v398, %v395
      %v437 = vpack.c.bf16 %v406, %v403
      %v438 = vpack.c.bf16 %v414, %v411
      %v439 = vpack.c.bf16 %v422, %v419
      %v440 = vpack.c.bf16 %v430, %v427
      %v449 = vunpack.c.l.b16 %v433
      %v450 = vunpack.c.h.b16 %v433
      %v451 = vunpack.c.l.b16 %v434
      %v452 = vunpack.c.h.b16 %v434
      %v453 = vunpack.c.l.b16 %v435
      %v454 = vunpack.c.h.b16 %v435
      %v455 = vunpack.c.l.b16 %v436
      %v456 = vunpack.c.h.b16 %v436
      %v457 = vunpack.c.l.b16 %v437
      %v458 = vunpack.c.h.b16 %v437
      %v459 = vunpack.c.l.b16 %v438
      %v460 = vunpack.c.h.b16 %v438
      %v461 = vunpack.c.l.b16 %v439
      %v462 = vunpack.c.h.b16 %v439
      %v463 = vunpack.c.l.b16 %v440
      %v464 = vunpack.c.h.b16 %v440
      %v465 = vpack.c.b16 %v449, %v449
      %v466 = vpack.c.b16 %v450, %v450
      %v467 = vpack.c.b16 %v451, %v451
      %v468 = vpack.c.b16 %v452, %v452
      %v469 = vpack.c.b16 %v453, %v453
      %v470 = vpack.c.b16 %v454, %v454
      %v471 = vpack.c.b16 %v455, %v455
      %v472 = vpack.c.b16 %v456, %v456
      %v473 = vpack.c.b16 %v457, %v457
      %v474 = vpack.c.b16 %v458, %v458
      %v475 = vpack.c.b16 %v459, %v459
      %v476 = vpack.c.b16 %v460, %v460
      %v477 = vpack.c.b16 %v461, %v461
      %v478 = vpack.c.b16 %v462, %v462
      %v479 = vpack.c.b16 %v463, %v463
      %v480 = vpack.c.b16 %v464, %v464
      %497 = vst [vmem:[#allocation3] sm:$0xf] %v465
      %498 = vst [vmem:[#allocation3 + $0x4] sm:$0xf] %v466
      %499 = vst [vmem:[#allocation3 + $0x8] sm:$0xf] %v467
      %500 = vst [vmem:[#allocation3 + $0xc] sm:$0xf] %v468
      %501 = vst [vmem:[#allocation3 + $0x10] sm:$0xf] %v469
      %502 = vst [vmem:[#allocation3 + $0x14] sm:$0xf] %v470
      %503 = vst [vmem:[#allocation3 + $0x18] sm:$0xf] %v471
      %504 = vst [vmem:[#allocation3 + $0x1c] sm:$0xf] %v472
      %505 = vst [vmem:[#allocation3 + $0x20] sm:$0xf] %v473
      %506 = vst [vmem:[#allocation3 + $0x24] sm:$0xf] %v474
      %507 = vst [vmem:[#allocation3 + $0x28] sm:$0xf] %v475
      %508 = vst [vmem:[#allocation3 + $0x2c] sm:$0xf] %v476
      %509 = vst [vmem:[#allocation3 + $0x30] sm:$0xf] %v477
      %510 = vst [vmem:[#allocation3 + $0x34] sm:$0xf] %v478
      %511 = vst [vmem:[#allocation3 + $0x38] sm:$0xf] %v479
      %512 = vst [vmem:[#allocation3 + $0x3c] sm:$0xf] %v480
    $region45: #{tpu_custom_call.1} parent=1 // pred_fallthru
      _
    %s513 = smul.u32 0, 256
    // Predicated region
    $region46: #{tpu_custom_call.1} parent=1 // pred_check
      %p514 = pneg %p106
    $region47: #{tpu_custom_call.1} parent=1 // pred_check_branch
      %516 = sbr.rel (%p514) target = $region49
    $region48: #{tpu_custom_call.1} parent=1 // pred_region
      %v517 = vld [vmem:[#allocation4] sm:$0xff]
      %v518 = vld [vmem:[#allocation4 + $0x8] sm:$0xff]
      %v519 = vld [vmem:[#allocation4 + $0x10] sm:$0xff]
      %v520 = vld [vmem:[#allocation4 + $0x18] sm:$0xff]
      %v521 = vld [vmem:[#allocation4 + $0x20] sm:$0xff]
      %v522 = vld [vmem:[#allocation4 + $0x28] sm:$0xff]
      %v523 = vld [vmem:[#allocation4 + $0x30] sm:$0xff]
      %v524 = vld [vmem:[#allocation4 + $0x38] sm:$0xff]
      %v525 = vld [vmem:[#allocation4 + $0x40] sm:$0xff]
      %v526 = vld [vmem:[#allocation4 + $0x48] sm:$0xff]
      %v527 = vld [vmem:[#allocation4 + $0x50] sm:$0xff]
      %v528 = vld [vmem:[#allocation4 + $0x58] sm:$0xff]
      %v529 = vld [vmem:[#allocation4 + $0x60] sm:$0xff]
      %v530 = vld [vmem:[#allocation4 + $0x68] sm:$0xff]
      %v531 = vld [vmem:[#allocation4 + $0x70] sm:$0xff]
      %v532 = vld [vmem:[#allocation4 + $0x78] sm:$0xff]
      %v533 = vld [vmem:[#allocation7] sm:$0xff]
      %v534 = vld [vmem:[#allocation7 + $0x8] sm:$0xff]
      %v535 = vld [vmem:[#allocation7 + $0x10] sm:$0xff]
      %v536 = vld [vmem:[#allocation7 + $0x18] sm:$0xff]
      %v537 = vld [vmem:[#allocation7 + $0x20] sm:$0xff]
      %v538 = vld [vmem:[#allocation7 + $0x28] sm:$0xff]
      %v539 = vld [vmem:[#allocation7 + $0x30] sm:$0xff]
      %v540 = vld [vmem:[#allocation7 + $0x38] sm:$0xff]
      %v541 = vld [vmem:[#allocation7 + $0x40] sm:$0xff]
      %v542 = vld [vmem:[#allocation7 + $0x48] sm:$0xff]
      %v543 = vld [vmem:[#allocation7 + $0x50] sm:$0xff]
      %v544 = vld [vmem:[#allocation7 + $0x58] sm:$0xff]
      %v545 = vld [vmem:[#allocation7 + $0x60] sm:$0xff]
      %v546 = vld [vmem:[#allocation7 + $0x68] sm:$0xff]
      %v547 = vld [vmem:[#allocation7 + $0x70] sm:$0xff]
      %v548 = vld [vmem:[#allocation7 + $0x78] sm:$0xff]
      %v549 = vld [vmem:[#allocation7 + $0x80] sm:$0xff]
      %v550 = vld [vmem:[#allocation7 + $0x88] sm:$0xff]
      %v551 = vld [vmem:[#allocation7 + $0x90] sm:$0xff]
      %v552 = vld [vmem:[#allocation7 + $0x98] sm:$0xff]
      %v553 = vld [vmem:[#allocation7 + $0xa0] sm:$0xff]
      %v554 = vld [vmem:[#allocation7 + $0xa8] sm:$0xff]
      %v555 = vld [vmem:[#allocation7 + $0xb0] sm:$0xff]
      %v556 = vld [vmem:[#allocation7 + $0xb8] sm:$0xff]
      %v557 = vld [vmem:[#allocation7 + $0xc0] sm:$0xff]
      %v558 = vld [vmem:[#allocation7 + $0xc8] sm:$0xff]
      %v559 = vld [vmem:[#allocation7 + $0xd0] sm:$0xff]
      %v560 = vld [vmem:[#allocation7 + $0xd8] sm:$0xff]
      %v561 = vld [vmem:[#allocation7 + $0xe0] sm:$0xff]
      %v562 = vld [vmem:[#allocation7 + $0xe8] sm:$0xff]
      %v563 = vld [vmem:[#allocation7 + $0xf0] sm:$0xff]
      %v564 = vld [vmem:[#allocation7 + $0xf8] sm:$0xff]
      %v565 = vld [vmem:[#allocation3] sm:$0xf]
      %v566 = vld [vmem:[#allocation3 + $0x4] sm:$0xf]
      %v567 = vld [vmem:[#allocation3 + $0x8] sm:$0xf]
      %v568 = vld [vmem:[#allocation3 + $0xc] sm:$0xf]
      %v569 = vld [vmem:[#allocation3 + $0x10] sm:$0xf]
      %v570 = vld [vmem:[#allocation3 + $0x14] sm:$0xf]
      %v571 = vld [vmem:[#allocation3 + $0x18] sm:$0xf]
      %v572 = vld [vmem:[#allocation3 + $0x1c] sm:$0xf]
      %v573 = vld [vmem:[#allocation3 + $0x20] sm:$0xf]
      %v574 = vld [vmem:[#allocation3 + $0x24] sm:$0xf]
      %v575 = vld [vmem:[#allocation3 + $0x28] sm:$0xf]
      %v576 = vld [vmem:[#allocation3 + $0x2c] sm:$0xf]
      %v577 = vld [vmem:[#allocation3 + $0x30] sm:$0xf]
      %v578 = vld [vmem:[#allocation3 + $0x34] sm:$0xf]
      %v579 = vld [vmem:[#allocation3 + $0x38] sm:$0xf]
      %v580 = vld [vmem:[#allocation3 + $0x3c] sm:$0xf]
      %v581 = vld [vmem:[#allocation10] sm:$0xff]
      %v582 = vld [vmem:[#allocation10 + $0x8] sm:$0xff]
      %v583 = vld [vmem:[#allocation10 + $0x10] sm:$0xff]
      %v584 = vld [vmem:[#allocation10 + $0x18] sm:$0xff]
      %v585 = vld [vmem:[#allocation10 + $0x20] sm:$0xff]
      %v586 = vld [vmem:[#allocation10 + $0x28] sm:$0xff]
      %v587 = vld [vmem:[#allocation10 + $0x30] sm:$0xff]
      %v588 = vld [vmem:[#allocation10 + $0x38] sm:$0xff]
      %v589 = vld [vmem:[#allocation10 + $0x40] sm:$0xff]
      %v590 = vld [vmem:[#allocation10 + $0x48] sm:$0xff]
      %v591 = vld [vmem:[#allocation10 + $0x50] sm:$0xff]
      %v592 = vld [vmem:[#allocation10 + $0x58] sm:$0xff]
      %v593 = vld [vmem:[#allocation10 + $0x60] sm:$0xff]
      %v594 = vld [vmem:[#allocation10 + $0x68] sm:$0xff]
      %v595 = vld [vmem:[#allocation10 + $0x70] sm:$0xff]
      %v596 = vld [vmem:[#allocation10 + $0x78] sm:$0xff]
      %v613 = vunpack.c.l.b16 %v565
      %v614 = vunpack.c.l.b16 %v566
      %v615 = vunpack.c.l.b16 %v567
      %v616 = vunpack.c.l.b16 %v568
      %v617 = vunpack.c.l.b16 %v569
      %v618 = vunpack.c.l.b16 %v570
      %v619 = vunpack.c.l.b16 %v571
      %v620 = vunpack.c.l.b16 %v572
      %v621 = vunpack.c.l.b16 %v573
      %v622 = vunpack.c.l.b16 %v574
      %v623 = vunpack.c.l.b16 %v575
      %v624 = vunpack.c.l.b16 %v576
      %v625 = vunpack.c.l.b16 %v577
      %v626 = vunpack.c.l.b16 %v578
      %v627 = vunpack.c.l.b16 %v579
      %v628 = vunpack.c.l.b16 %v580
      %v629 = vpack.c.b16 %v614, %v613
      %v630 = vpack.c.b16 %v616, %v615
      %v631 = vpack.c.b16 %v618, %v617
      %v632 = vpack.c.b16 %v620, %v619
      %v633 = vpack.c.b16 %v622, %v621
      %v634 = vpack.c.b16 %v624, %v623
      %v635 = vpack.c.b16 %v626, %v625
      %v636 = vpack.c.b16 %v628, %v627
      %v661 = vunpack.c.l.b16 %v581
      %v662 = vunpack.c.h.b16 %v581
      %v663 = vunpack.c.l.b16 %v582
      %v664 = vunpack.c.h.b16 %v582
      %v665 = vunpack.c.l.b16 %v583
      %v666 = vunpack.c.h.b16 %v583
      %v667 = vunpack.c.l.b16 %v584
      %v668 = vunpack.c.h.b16 %v584
      %v669 = vunpack.c.l.b16 %v585
      %v670 = vunpack.c.h.b16 %v585
      %v671 = vunpack.c.l.b16 %v586
      %v672 = vunpack.c.h.b16 %v586
      %v673 = vunpack.c.l.b16 %v587
      %v674 = vunpack.c.h.b16 %v587
      %v675 = vunpack.c.l.b16 %v588
      %v676 = vunpack.c.h.b16 %v588
      %v677 = vunpack.c.l.b16 %v589
      %v678 = vunpack.c.h.b16 %v589
      %v679 = vunpack.c.l.b16 %v590
      %v680 = vunpack.c.h.b16 %v590
      %v681 = vunpack.c.l.b16 %v591
      %v682 = vunpack.c.h.b16 %v591
      %v683 = vunpack.c.l.b16 %v592
      %v684 = vunpack.c.h.b16 %v592
      %v685 = vunpack.c.l.b16 %v593
      %v686 = vunpack.c.h.b16 %v593
      %v687 = vunpack.c.l.b16 %v594
      %v688 = vunpack.c.h.b16 %v594
      %v689 = vunpack.c.l.b16 %v595
      %v690 = vunpack.c.h.b16 %v595
      %v691 = vunpack.c.l.b16 %v596
      %v692 = vunpack.c.h.b16 %v596
      %v693 = vpack.c.b16 %v663, %v661
      %v694 = vpack.c.b16 %v664, %v662
      %v695 = vpack.c.b16 %v667, %v665
      %v696 = vpack.c.b16 %v668, %v666
      %v697 = vpack.c.b16 %v671, %v669
      %v698 = vpack.c.b16 %v672, %v670
      %v699 = vpack.c.b16 %v675, %v673
      %v700 = vpack.c.b16 %v676, %v674
      %v701 = vpack.c.b16 %v679, %v677
      %v702 = vpack.c.b16 %v680, %v678
      %v703 = vpack.c.b16 %v683, %v681
      %v704 = vpack.c.b16 %v684, %v682
      %v705 = vpack.c.b16 %v687, %v685
      %v706 = vpack.c.b16 %v688, %v686
      %v707 = vpack.c.b16 %v691, %v689
      %v708 = vpack.c.b16 %v692, %v690
      %725 = vmatprep.subr.bf16.mxu0 %v708
      %726 = vmatpush1.bf16.msra.mxu0 %v707
      %727 = vmatprep.subr.bf16.mxu0 %v706
      %728 = vmatpush1.bf16.msra.mxu0 %v705
      %729 = vmatprep.subr.bf16.mxu0 %v704
      %730 = vmatpush1.bf16.msra.mxu0 %v703
      %731 = vmatprep.subr.bf16.mxu0 %v702
      %732 = vmatpush1.bf16.msra.mxu0 %v701
      %733 = vmatprep.subr.bf16.mxu0 %v700
      %734 = vmatpush1.bf16.msra.mxu0 %v699
      %735 = vmatprep.subr.bf16.mxu0 %v698
      %736 = vmatpush1.bf16.msra.mxu0 %v697
      %737 = vmatprep.subr.bf16.mxu0 %v696
      %738 = vmatpush1.bf16.msra.mxu0 %v695
      %739 = vmatprep.subr.bf16.mxu0 %v694
      %740 = vmatpush1.bf16.msra.mxu0 %v693
      %741 = vmatprep.subr.bf16.mxu0 0
      %742 = vmatpush2.bf16.msra.mxu0 0
      %743 = vmatprep.subr.bf16.mxu0 0
      %744 = vmatpush2.bf16.msra.mxu0 0
      %745 = vmatprep.subr.bf16.mxu0 0
      %746 = vmatpush2.bf16.msra.mxu0 0
      %747 = vmatprep.subr.bf16.mxu0 0
      %748 = vmatpush2.bf16.msra.mxu0 0
      %749 = vmatprep.subr.bf16.mxu0 0
      %750 = vmatpush2.bf16.msra.mxu0 0
      %751 = vmatprep.subr.bf16.mxu0 0
      %752 = vmatpush2.bf16.msra.mxu0 0
      %753 = vmatprep.subr.bf16.mxu0 0
      %754 = vmatpush2.bf16.msra.mxu0 0
      %755 = vmatprep.subr.bf16.mxu0 0
      %756 = vmatpush2.bf16.msra.mxu0 0
      %757 = vmatprep.mubr.bf16.mxu0 0
      %758 = vmatmul.mubr.bf16.gmra.mxu0 %v629
      %v759 = vpop.f32.mrf.mxu0
      %v760 = vadd.f32 0.0, %v759
      %v761 = vpop.f32.mrf.mxu0
      %v762 = vadd.f32 0.0, %v761
      %v763 = vpop.f32.mrf.mxu0
      %v764 = vadd.f32 0.0, %v763
      %v765 = vpop.f32.mrf.mxu0
      %v766 = vadd.f32 0.0, %v765
      %767 = vmatprep.mubr.bf16.mxu0 0
      %768 = vmatmul.mubr.bf16.gmra.mxu0 %v630
      %v769 = vpop.f32.mrf.mxu0
      %v770 = vadd.f32 0.0, %v769
      %v771 = vpop.f32.mrf.mxu0
      %v772 = vadd.f32 0.0, %v771
      %v773 = vpop.f32.mrf.mxu0
      %v774 = vadd.f32 0.0, %v773
      %v775 = vpop.f32.mrf.mxu0
      %v776 = vadd.f32 0.0, %v775
      %777 = vmatprep.mubr.bf16.mxu0 0
      %778 = vmatmul.mubr.bf16.gmra.mxu0 %v631
      %v779 = vpop.f32.mrf.mxu0
      %v780 = vadd.f32 0.0, %v779
      %v781 = vpop.f32.mrf.mxu0
      %v782 = vadd.f32 0.0, %v781
      %v783 = vpop.f32.mrf.mxu0
      %v784 = vadd.f32 0.0, %v783
      %v785 = vpop.f32.mrf.mxu0
      %v786 = vadd.f32 0.0, %v785
      %787 = vmatprep.mubr.bf16.mxu0 0
      %788 = vmatmul.mubr.bf16.gmra.mxu0 %v632
      %v789 = vpop.f32.mrf.mxu0
      %v790 = vadd.f32 0.0, %v789
      %v791 = vpop.f32.mrf.mxu0
      %v792 = vadd.f32 0.0, %v791
      %v793 = vpop.f32.mrf.mxu0
      %v794 = vadd.f32 0.0, %v793
      %v795 = vpop.f32.mrf.mxu0
      %v796 = vadd.f32 0.0, %v795
      %797 = vmatprep.mubr.bf16.mxu0 0
      %798 = vmatmul.mubr.bf16.gmra.mxu0 %v633
      %v799 = vpop.f32.mrf.mxu0
      %v800 = vadd.f32 0.0, %v799
      %v801 = vpop.f32.mrf.mxu0
      %v802 = vadd.f32 0.0, %v801
      %v803 = vpop.f32.mrf.mxu0
      %v804 = vadd.f32 0.0, %v803
      %v805 = vpop.f32.mrf.mxu0
      %v806 = vadd.f32 0.0, %v805
      %807 = vmatprep.mubr.bf16.mxu0 0
      %808 = vmatmul.mubr.bf16.gmra.mxu0 %v634
      %v809 = vpop.f32.mrf.mxu0
      %v810 = vadd.f32 0.0, %v809
      %v811 = vpop.f32.mrf.mxu0
      %v812 = vadd.f32 0.0, %v811
      %v813 = vpop.f32.mrf.mxu0
      %v814 = vadd.f32 0.0, %v813
      %v815 = vpop.f32.mrf.mxu0
      %v816 = vadd.f32 0.0, %v815
      %817 = vmatprep.mubr.bf16.mxu0 0
      %818 = vmatmul.mubr.bf16.gmra.mxu0 %v635
      %v819 = vpop.f32.mrf.mxu0
      %v820 = vadd.f32 0.0, %v819
      %v821 = vpop.f32.mrf.mxu0
      %v822 = vadd.f32 0.0, %v821
      %v823 = vpop.f32.mrf.mxu0
      %v824 = vadd.f32 0.0, %v823
      %v825 = vpop.f32.mrf.mxu0
      %v826 = vadd.f32 0.0, %v825
      %827 = vmatprep.mubr.bf16.mxu0 0
      %828 = vmatmul.mubr.bf16.gmra.mxu0 %v636
      %v829 = vpop.f32.mrf.mxu0
      %v830 = vadd.f32 0.0, %v829
      %v831 = vpop.f32.mrf.mxu0
      %v832 = vadd.f32 0.0, %v831
      %v833 = vpop.f32.mrf.mxu0
      %v834 = vadd.f32 0.0, %v833
      %v835 = vpop.f32.mrf.mxu0
      %v836 = vadd.f32 0.0, %v835
      %837 = vdwg.mxu0
      %v854 = vunpack.c.l.b16 %v517
      %v855 = vunpack.c.h.b16 %v517
      %v856 = vunpack.c.l.b16 %v518
      %v857 = vunpack.c.h.b16 %v518
      %v858 = vunpack.c.l.b16 %v519
      %v859 = vunpack.c.h.b16 %v519
      %v860 = vunpack.c.l.b16 %v520
      %v861 = vunpack.c.h.b16 %v520
      %v862 = vunpack.c.l.b16 %v521
      %v863 = vunpack.c.h.b16 %v521
      %v864 = vunpack.c.l.b16 %v522
      %v865 = vunpack.c.h.b16 %v522
      %v866 = vunpack.c.l.b16 %v523
      %v867 = vunpack.c.h.b16 %v523
      %v868 = vunpack.c.l.b16 %v524
      %v869 = vunpack.c.h.b16 %v524
      %v870 = vunpack.c.l.b16 %v525
      %v871 = vunpack.c.h.b16 %v525
      %v872 = vunpack.c.l.b16 %v526
      %v873 = vunpack.c.h.b16 %v526
      %v874 = vunpack.c.l.b16 %v527
      %v875 = vunpack.c.h.b16 %v527
      %v876 = vunpack.c.l.b16 %v528
      %v877 = vunpack.c.h.b16 %v528
      %v878 = vunpack.c.l.b16 %v529
      %v879 = vunpack.c.h.b16 %v529
      %v880 = vunpack.c.l.b16 %v530
      %v881 = vunpack.c.h.b16 %v530
      %v882 = vunpack.c.l.b16 %v531
      %v883 = vunpack.c.h.b16 %v531
      %v884 = vunpack.c.l.b16 %v532
      %v885 = vunpack.c.h.b16 %v532
      %v886 = vpack.c.b16 %v856, %v854
      %v887 = vpack.c.b16 %v857, %v855
      %v888 = vpack.c.b16 %v860, %v858
      %v889 = vpack.c.b16 %v861, %v859
      %v890 = vpack.c.b16 %v864, %v862
      %v891 = vpack.c.b16 %v865, %v863
      %v892 = vpack.c.b16 %v868, %v866
      %v893 = vpack.c.b16 %v869, %v867
      %v894 = vpack.c.b16 %v872, %v870
      %v895 = vpack.c.b16 %v873, %v871
      %v896 = vpack.c.b16 %v876, %v874
      %v897 = vpack.c.b16 %v877, %v875
      %v898 = vpack.c.b16 %v880, %v878
      %v899 = vpack.c.b16 %v881, %v879
      %v900 = vpack.c.b16 %v884, %v882
      %v901 = vpack.c.b16 %v885, %v883
      %v950 = vunpack.c.l.b16 %v533
      %v951 = vunpack.c.h.b16 %v533
      %v952 = vunpack.c.l.b16 %v534
      %v953 = vunpack.c.h.b16 %v534
      %v954 = vunpack.c.l.b16 %v535
      %v955 = vunpack.c.h.b16 %v535
      %v956 = vunpack.c.l.b16 %v536
      %v957 = vunpack.c.h.b16 %v536
      %v958 = vunpack.c.l.b16 %v537
      %v959 = vunpack.c.h.b16 %v537
      %v960 = vunpack.c.l.b16 %v538
      %v961 = vunpack.c.h.b16 %v538
      %v962 = vunpack.c.l.b16 %v539
      %v963 = vunpack.c.h.b16 %v539
      %v964 = vunpack.c.l.b16 %v540
      %v965 = vunpack.c.h.b16 %v540
      %v966 = vunpack.c.l.b16 %v541
      %v967 = vunpack.c.h.b16 %v541
      %v968 = vunpack.c.l.b16 %v542
      %v969 = vunpack.c.h.b16 %v542
      %v970 = vunpack.c.l.b16 %v543
      %v971 = vunpack.c.h.b16 %v543
      %v972 = vunpack.c.l.b16 %v544
      %v973 = vunpack.c.h.b16 %v544
      %v974 = vunpack.c.l.b16 %v545
      %v975 = vunpack.c.h.b16 %v545
      %v976 = vunpack.c.l.b16 %v546
      %v977 = vunpack.c.h.b16 %v546
      %v978 = vunpack.c.l.b16 %v547
      %v979 = vunpack.c.h.b16 %v547
      %v980 = vunpack.c.l.b16 %v548
      %v981 = vunpack.c.h.b16 %v548
      %v982 = vunpack.c.l.b16 %v549
      %v983 = vunpack.c.h.b16 %v549
      %v984 = vunpack.c.l.b16 %v550
      %v985 = vunpack.c.h.b16 %v550
      %v986 = vunpack.c.l.b16 %v551
      %v987 = vunpack.c.h.b16 %v551
      %v988 = vunpack.c.l.b16 %v552
      %v989 = vunpack.c.h.b16 %v552
      %v990 = vunpack.c.l.b16 %v553
      %v991 = vunpack.c.h.b16 %v553
      %v992 = vunpack.c.l.b16 %v554
      %v993 = vunpack.c.h.b16 %v554
      %v994 = vunpack.c.l.b16 %v555
      %v995 = vunpack.c.h.b16 %v555
      %v996 = vunpack.c.l.b16 %v556
      %v997 = vunpack.c.h.b16 %v556
      %v998 = vunpack.c.l.b16 %v557
      %v999 = vunpack.c.h.b16 %v557
      %v1000 = vunpack.c.l.b16 %v558
      %v1001 = vunpack.c.h.b16 %v558
      %v1002 = vunpack.c.l.b16 %v559
      %v1003 = vunpack.c.h.b16 %v559
      %v1004 = vunpack.c.l.b16 %v560
      %v1005 = vunpack.c.h.b16 %v560
      %v1006 = vunpack.c.l.b16 %v561
      %v1007 = vunpack.c.h.b16 %v561
      %v1008 = vunpack.c.l.b16 %v562
      %v1009 = vunpack.c.h.b16 %v562
      %v1010 = vunpack.c.l.b16 %v563
      %v1011 = vunpack.c.h.b16 %v563
      %v1012 = vunpack.c.l.b16 %v564
      %v1013 = vunpack.c.h.b16 %v564
      %v1014 = vpack.c.b16 %v952, %v950
      %v1015 = vpack.c.b16 %v953, %v951
      %v1016 = vpack.c.b16 %v956, %v954
      %v1017 = vpack.c.b16 %v957, %v955
      %v1018 = vpack.c.b16 %v960, %v958
      %v1019 = vpack.c.b16 %v961, %v959
      %v1020 = vpack.c.b16 %v964, %v962
      %v1021 = vpack.c.b16 %v965, %v963
      %v1022 = vpack.c.b16 %v968, %v966
      %v1023 = vpack.c.b16 %v969, %v967
      %v1024 = vpack.c.b16 %v972, %v970
      %v1025 = vpack.c.b16 %v973, %v971
      %v1026 = vpack.c.b16 %v976, %v974
      %v1027 = vpack.c.b16 %v977, %v975
      %v1028 = vpack.c.b16 %v980, %v978
      %v1029 = vpack.c.b16 %v981, %v979
      %v1030 = vpack.c.b16 %v984, %v982
      %v1031 = vpack.c.b16 %v985, %v983
      %v1032 = vpack.c.b16 %v988, %v986
      %v1033 = vpack.c.b16 %v989, %v987
      %v1034 = vpack.c.b16 %v992, %v990
      %v1035 = vpack.c.b16 %v993, %v991
      %v1036 = vpack.c.b16 %v996, %v994
      %v1037 = vpack.c.b16 %v997, %v995
      %v1038 = vpack.c.b16 %v1000, %v998
      %v1039 = vpack.c.b16 %v1001, %v999
      %v1040 = vpack.c.b16 %v1004, %v1002
      %v1041 = vpack.c.b16 %v1005, %v1003
      %v1042 = vpack.c.b16 %v1008, %v1006
      %v1043 = vpack.c.b16 %v1009, %v1007
      %v1044 = vpack.c.b16 %v1012, %v1010
      %v1045 = vpack.c.b16 %v1013, %v1011
      %1078 = vmatprep.subr.bf16.mxu0 %v1029
      %1079 = vmatpush1.bf16.msra.mxu0 %v1028
      %1080 = vmatprep.subr.bf16.mxu0 %v1027
      %1081 = vmatpush1.bf16.msra.mxu0 %v1026
      %1082 = vmatprep.subr.bf16.mxu0 %v1025
      %1083 = vmatpush1.bf16.msra.mxu0 %v1024
      %1084 = vmatprep.subr.bf16.mxu0 %v1023
      %1085 = vmatpush1.bf16.msra.mxu0 %v1022
      %1086 = vmatprep.subr.bf16.mxu0 %v1021
      %1087 = vmatpush1.bf16.msra.mxu0 %v1020
      %1088 = vmatprep.subr.bf16.mxu0 %v1019
      %1089 = vmatpush1.bf16.msra.mxu0 %v1018
      %1090 = vmatprep.subr.bf16.mxu0 %v1017
      %1091 = vmatpush1.bf16.msra.mxu0 %v1016
      %1092 = vmatprep.subr.bf16.mxu0 %v1015
      %1093 = vmatpush1.bf16.msra.mxu0 %v1014
      %1094 = vmatprep.subr.bf16.mxu0 %v1045
      %1095 = vmatpush2.bf16.msra.mxu0 %v1044
      %1096 = vmatprep.subr.bf16.mxu0 %v1043
      %1097 = vmatpush2.bf16.msra.mxu0 %v1042
      %1098 = vmatprep.subr.bf16.mxu0 %v1041
      %1099 = vmatpush2.bf16.msra.mxu0 %v1040
      %1100 = vmatprep.subr.bf16.mxu0 %v1039
      %1101 = vmatpush2.bf16.msra.mxu0 %v1038
      %1102 = vmatprep.subr.bf16.mxu0 %v1037
      %1103 = vmatpush2.bf16.msra.mxu0 %v1036
      %1104 = vmatprep.subr.bf16.mxu0 %v1035
      %1105 = vmatpush2.bf16.msra.mxu0 %v1034
      %1106 = vmatprep.subr.bf16.mxu0 %v1033
      %1107 = vmatpush2.bf16.msra.mxu0 %v1032
      %1108 = vmatprep.subr.bf16.mxu0 %v1031
      %1109 = vmatpush2.bf16.msra.mxu0 %v1030
      %1110 = vmatprep.mubr.bf16.mxu0 %v887
      %1111 = vmatmul.mubr.bf16.gmra.mxu0 %v886
      %v1112 = vpop.f32.mrf.mxu0
      %v1113 = vadd.f32 %v760, %v1112
      %v1114 = vpop.f32.mrf.mxu0
      %v1115 = vadd.f32 %v762, %v1114
      %v1116 = vpop.f32.mrf.mxu0
      %v1117 = vadd.f32 %v764, %v1116
      %v1118 = vpop.f32.mrf.mxu0
      %v1119 = vadd.f32 %v766, %v1118
      %1120 = vmatprep.mubr.bf16.mxu0 %v889
      %1121 = vmatmul.mubr.bf16.gmra.mxu0 %v888
      %v1122 = vpop.f32.mrf.mxu0
      %v1123 = vadd.f32 %v770, %v1122
      %v1124 = vpop.f32.mrf.mxu0
      %v1125 = vadd.f32 %v772, %v1124
      %v1126 = vpop.f32.mrf.mxu0
      %v1127 = vadd.f32 %v774, %v1126
      %v1128 = vpop.f32.mrf.mxu0
      %v1129 = vadd.f32 %v776, %v1128
      %1130 = vmatprep.mubr.bf16.mxu0 %v891
      %1131 = vmatmul.mubr.bf16.gmra.mxu0 %v890
      %v1132 = vpop.f32.mrf.mxu0
      %v1133 = vadd.f32 %v780, %v1132
      %v1134 = vpop.f32.mrf.mxu0
      %v1135 = vadd.f32 %v782, %v1134
      %v1136 = vpop.f32.mrf.mxu0
      %v1137 = vadd.f32 %v784, %v1136
      %v1138 = vpop.f32.mrf.mxu0
      %v1139 = vadd.f32 %v786, %v1138
      %1140 = vmatprep.mubr.bf16.mxu0 %v893
      %1141 = vmatmul.mubr.bf16.gmra.mxu0 %v892
      %v1142 = vpop.f32.mrf.mxu0
      %v1143 = vadd.f32 %v790, %v1142
      %v1144 = vpop.f32.mrf.mxu0
      %v1145 = vadd.f32 %v792, %v1144
      %v1146 = vpop.f32.mrf.mxu0
      %v1147 = vadd.f32 %v794, %v1146
      %v1148 = vpop.f32.mrf.mxu0
      %v1149 = vadd.f32 %v796, %v1148
      %1150 = vmatprep.mubr.bf16.mxu0 %v895
      %1151 = vmatmul.mubr.bf16.gmra.mxu0 %v894
      %v1152 = vpop.f32.mrf.mxu0
      %v1153 = vadd.f32 %v800, %v1152
      %v1154 = vpop.f32.mrf.mxu0
      %v1155 = vadd.f32 %v802, %v1154
      %v1156 = vpop.f32.mrf.mxu0
      %v1157 = vadd.f32 %v804, %v1156
      %v1158 = vpop.f32.mrf.mxu0
      %v1159 = vadd.f32 %v806, %v1158
      %1160 = vmatprep.mubr.bf16.mxu0 %v897
      %1161 = vmatmul.mubr.bf16.gmra.mxu0 %v896
      %v1162 = vpop.f32.mrf.mxu0
      %v1163 = vadd.f32 %v810, %v1162
      %v1164 = vpop.f32.mrf.mxu0
      %v1165 = vadd.f32 %v812, %v1164
      %v1166 = vpop.f32.mrf.mxu0
      %v1167 = vadd.f32 %v814, %v1166
      %v1168 = vpop.f32.mrf.mxu0
      %v1169 = vadd.f32 %v816, %v1168
      %1170 = vmatprep.mubr.bf16.mxu0 %v899
      %1171 = vmatmul.mubr.bf16.gmra.mxu0 %v898
      %v1172 = vpop.f32.mrf.mxu0
      %v1173 = vadd.f32 %v820, %v1172
      %v1174 = vpop.f32.mrf.mxu0
      %v1175 = vadd.f32 %v822, %v1174
      %v1176 = vpop.f32.mrf.mxu0
      %v1177 = vadd.f32 %v824, %v1176
      %v1178 = vpop.f32.mrf.mxu0
      %v1179 = vadd.f32 %v826, %v1178
      %1180 = vmatprep.mubr.bf16.mxu0 %v901
      %1181 = vmatmul.mubr.bf16.gmra.mxu0 %v900
      %v1182 = vpop.f32.mrf.mxu0
      %v1183 = vadd.f32 %v830, %v1182
      %v1184 = vpop.f32.mrf.mxu0
      %v1185 = vadd.f32 %v832, %v1184
      %v1186 = vpop.f32.mrf.mxu0
      %v1187 = vadd.f32 %v834, %v1186
      %v1188 = vpop.f32.mrf.mxu0
      %v1189 = vadd.f32 %v836, %v1188
      %1190 = vdwg.mxu0
      %v1191 = vpack.c.bf16 %v1117, %v1113
      %v1192 = vpack.c.bf16 %v1119, %v1115
      %v1193 = vpack.c.bf16 %v1127, %v1123
      %v1194 = vpack.c.bf16 %v1129, %v1125
      %v1195 = vpack.c.bf16 %v1137, %v1133
      %v1196 = vpack.c.bf16 %v1139, %v1135
      %v1197 = vpack.c.bf16 %v1147, %v1143
      %v1198 = vpack.c.bf16 %v1149, %v1145
      %v1199 = vpack.c.bf16 %v1157, %v1153
      %v1200 = vpack.c.bf16 %v1159, %v1155
      %v1201 = vpack.c.bf16 %v1167, %v1163
      %v1202 = vpack.c.bf16 %v1169, %v1165
      %v1203 = vpack.c.bf16 %v1177, %v1173
      %v1204 = vpack.c.bf16 %v1179, %v1175
      %v1205 = vpack.c.bf16 %v1187, %v1183
      %v1206 = vpack.c.bf16 %v1189, %v1185
      %v1223 = vunpack.c.l.b16 %v1191
      %v1224 = vunpack.c.l.b16 %v1192
      %v1225 = vunpack.c.h.b16 %v1191
      %v1226 = vunpack.c.h.b16 %v1192
      %v1227 = vunpack.c.l.b16 %v1193
      %v1228 = vunpack.c.l.b16 %v1194
      %v1229 = vunpack.c.h.b16 %v1193
      %v1230 = vunpack.c.h.b16 %v1194
      %v1231 = vunpack.c.l.b16 %v1195
      %v1232 = vunpack.c.l.b16 %v1196
      %v1233 = vunpack.c.h.b16 %v1195
      %v1234 = vunpack.c.h.b16 %v1196
      %v1235 = vunpack.c.l.b16 %v1197
      %v1236 = vunpack.c.l.b16 %v1198
      %v1237 = vunpack.c.h.b16 %v1197
      %v1238 = vunpack.c.h.b16 %v1198
      %v1239 = vunpack.c.l.b16 %v1199
      %v1240 = vunpack.c.l.b16 %v1200
      %v1241 = vunpack.c.h.b16 %v1199
      %v1242 = vunpack.c.h.b16 %v1200
      %v1243 = vunpack.c.l.b16 %v1201
      %v1244 = vunpack.c.l.b16 %v1202
      %v1245 = vunpack.c.h.b16 %v1201
      %v1246 = vunpack.c.h.b16 %v1202
      %v1247 = vunpack.c.l.b16 %v1203
      %v1248 = vunpack.c.l.b16 %v1204
      %v1249 = vunpack.c.h.b16 %v1203
      %v1250 = vunpack.c.h.b16 %v1204
      %v1251 = vunpack.c.l.b16 %v1205
      %v1252 = vunpack.c.l.b16 %v1206
      %v1253 = vunpack.c.h.b16 %v1205
      %v1254 = vunpack.c.h.b16 %v1206
      %v1255 = vpack.c.b16 %v1224, %v1223
      %v1256 = vpack.c.b16 %v1226, %v1225
      %v1257 = vpack.c.b16 %v1228, %v1227
      %v1258 = vpack.c.b16 %v1230, %v1229
      %v1259 = vpack.c.b16 %v1232, %v1231
      %v1260 = vpack.c.b16 %v1234, %v1233
      %v1261 = vpack.c.b16 %v1236, %v1235
      %v1262 = vpack.c.b16 %v1238, %v1237
      %v1263 = vpack.c.b16 %v1240, %v1239
      %v1264 = vpack.c.b16 %v1242, %v1241
      %v1265 = vpack.c.b16 %v1244, %v1243
      %v1266 = vpack.c.b16 %v1246, %v1245
      %v1267 = vpack.c.b16 %v1248, %v1247
      %v1268 = vpack.c.b16 %v1250, %v1249
      %v1269 = vpack.c.b16 %v1252, %v1251
      %v1270 = vpack.c.b16 %v1254, %v1253
      %s1287 = sshra.s32 %s513, 7
      %s1288 = sand.u32 %s513, 127
      %s1289 = smul.addr %s1287, 4
      %s1290 = scalar_lea.vmem [#allocation2], %s1289
      %1291 = vst [vmem:[%s1290] sm:$0xff] %v1255
      %1292 = vst [vmem:[%s1290 + $0x8] sm:$0xff] %v1256
      %1293 = vst [vmem:[%s1290 + $0x10] sm:$0xff] %v1257
      %1294 = vst [vmem:[%s1290 + $0x18] sm:$0xff] %v1258
      %1295 = vst [vmem:[%s1290 + $0x20] sm:$0xff] %v1259
      %1296 = vst [vmem:[%s1290 + $0x28] sm:$0xff] %v1260
      %1297 = vst [vmem:[%s1290 + $0x30] sm:$0xff] %v1261
      %1298 = vst [vmem:[%s1290 + $0x38] sm:$0xff] %v1262
      %1299 = vst [vmem:[%s1290 + $0x40] sm:$0xff] %v1263
      %1300 = vst [vmem:[%s1290 + $0x48] sm:$0xff] %v1264
      %1301 = vst [vmem:[%s1290 + $0x50] sm:$0xff] %v1265
      %1302 = vst [vmem:[%s1290 + $0x58] sm:$0xff] %v1266
      %1303 = vst [vmem:[%s1290 + $0x60] sm:$0xff] %v1267
      %1304 = vst [vmem:[%s1290 + $0x68] sm:$0xff] %v1268
      %1305 = vst [vmem:[%s1290 + $0x70] sm:$0xff] %v1269
      %1306 = vst [vmem:[%s1290 + $0x78] sm:$0xff] %v1270
    $region49: #{tpu_custom_call.1} parent=1 // pred_fallthru
      _
    // Predicated region
    $region50: #{tpu_custom_call.1} parent=1 // pred_check
      %p1307 = pneg %p107
    $region51: #{tpu_custom_call.1} parent=1 // pred_check_branch
      %1309 = sbr.rel (%p1307) target = $region53
    $region52: #{tpu_custom_call.1} parent=1 // pred_region
      %1310 = vst [vmem:[#allocation13] sm:$0xff] 0.0
      %1311 = vst [vmem:[#allocation13 + $0x8] sm:$0xff] 0.0
      %1312 = vst [vmem:[#allocation13 + $0x10] sm:$0xff] 0.0
      %1313 = vst [vmem:[#allocation13 + $0x18] sm:$0xff] 0.0
      %1314 = vst [vmem:[#allocation13 + $0x20] sm:$0xff] 0.0
      %1315 = vst [vmem:[#allocation13 + $0x28] sm:$0xff] 0.0
      %1316 = vst [vmem:[#allocation13 + $0x30] sm:$0xff] 0.0
      %1317 = vst [vmem:[#allocation13 + $0x38] sm:$0xff] 0.0
      %1318 = vst [vmem:[#allocation13 + $0x40] sm:$0xff] 0.0
      %1319 = vst [vmem:[#allocation13 + $0x48] sm:$0xff] 0.0
      %1320 = vst [vmem:[#allocation13 + $0x50] sm:$0xff] 0.0
      %1321 = vst [vmem:[#allocation13 + $0x58] sm:$0xff] 0.0
      %1322 = vst [vmem:[#allocation13 + $0x60] sm:$0xff] 0.0
      %1323 = vst [vmem:[#allocation13 + $0x68] sm:$0xff] 0.0
      %1324 = vst [vmem:[#allocation13 + $0x70] sm:$0xff] 0.0
      %1325 = vst [vmem:[#allocation13 + $0x78] sm:$0xff] 0.0
      %1326 = vst [vmem:[#allocation13 + $0x80] sm:$0xff] 0.0
      %1327 = vst [vmem:[#allocation13 + $0x88] sm:$0xff] 0.0
      %1328 = vst [vmem:[#allocation13 + $0x90] sm:$0xff] 0.0
      %1329 = vst [vmem:[#allocation13 + $0x98] sm:$0xff] 0.0
      %1330 = vst [vmem:[#allocation13 + $0xa0] sm:$0xff] 0.0
      %1331 = vst [vmem:[#allocation13 + $0xa8] sm:$0xff] 0.0
      %1332 = vst [vmem:[#allocation13 + $0xb0] sm:$0xff] 0.0
      %1333 = vst [vmem:[#allocation13 + $0xb8] sm:$0xff] 0.0
      %1334 = vst [vmem:[#allocation13 + $0xc0] sm:$0xff] 0.0
      %1335 = vst [vmem:[#allocation13 + $0xc8] sm:$0xff] 0.0
      %1336 = vst [vmem:[#allocation13 + $0xd0] sm:$0xff] 0.0
      %1337 = vst [vmem:[#allocation13 + $0xd8] sm:$0xff] 0.0
      %1338 = vst [vmem:[#allocation13 + $0xe0] sm:$0xff] 0.0
      %1339 = vst [vmem:[#allocation13 + $0xe8] sm:$0xff] 0.0
      %1340 = vst [vmem:[#allocation13 + $0xf0] sm:$0xff] 0.0
      %1341 = vst [vmem:[#allocation13 + $0xf8] sm:$0xff] 0.0
      %1342 = vst [vmem:[#allocation13 + $0x100] sm:$0xff] 0.0
      %1343 = vst [vmem:[#allocation13 + $0x108] sm:$0xff] 0.0
      %1344 = vst [vmem:[#allocation13 + $0x110] sm:$0xff] 0.0
      %1345 = vst [vmem:[#allocation13 + $0x118] sm:$0xff] 0.0
      %1346 = vst [vmem:[#allocation13 + $0x120] sm:$0xff] 0.0
      %1347 = vst [vmem:[#allocation13 + $0x128] sm:$0xff] 0.0
      %1348 = vst [vmem:[#allocation13 + $0x130] sm:$0xff] 0.0
      %1349 = vst [vmem:[#allocation13 + $0x138] sm:$0xff] 0.0
      %1350 = vst [vmem:[#allocation13 + $0x140] sm:$0xff] 0.0
      %1351 = vst [vmem:[#allocation13 + $0x148] sm:$0xff] 0.0
      %1352 = vst [vmem:[#allocation13 + $0x150] sm:$0xff] 0.0
      %1353 = vst [vmem:[#allocation13 + $0x158] sm:$0xff] 0.0
      %1354 = vst [vmem:[#allocation13 + $0x160] sm:$0xff] 0.0
      %1355 = vst [vmem:[#allocation13 + $0x168] sm:$0xff] 0.0
      %1356 = vst [vmem:[#allocation13 + $0x170] sm:$0xff] 0.0
      %1357 = vst [vmem:[#allocation13 + $0x178] sm:$0xff] 0.0
      %1358 = vst [vmem:[#allocation13 + $0x180] sm:$0xff] 0.0
      %1359 = vst [vmem:[#allocation13 + $0x188] sm:$0xff] 0.0
      %1360 = vst [vmem:[#allocation13 + $0x190] sm:$0xff] 0.0
      %1361 = vst [vmem:[#allocation13 + $0x198] sm:$0xff] 0.0
      %1362 = vst [vmem:[#allocation13 + $0x1a0] sm:$0xff] 0.0
      %1363 = vst [vmem:[#allocation13 + $0x1a8] sm:$0xff] 0.0
      %1364 = vst [vmem:[#allocation13 + $0x1b0] sm:$0xff] 0.0
      %1365 = vst [vmem:[#allocation13 + $0x1b8] sm:$0xff] 0.0
      %1366 = vst [vmem:[#allocation13 + $0x1c0] sm:$0xff] 0.0
      %1367 = vst [vmem:[#allocation13 + $0x1c8] sm:$0xff] 0.0
      %1368 = vst [vmem:[#allocation13 + $0x1d0] sm:$0xff] 0.0
      %1369 = vst [vmem:[#allocation13 + $0x1d8] sm:$0xff] 0.0
      %1370 = vst [vmem:[#allocation13 + $0x1e0] sm:$0xff] 0.0
      %1371 = vst [vmem:[#allocation13 + $0x1e8] sm:$0xff] 0.0
      %1372 = vst [vmem:[#allocation13 + $0x1f0] sm:$0xff] 0.0
      %1373 = vst [vmem:[#allocation13 + $0x1f8] sm:$0xff] 0.0
      %1374 = vst [vmem:[#allocation13 + $0x200] sm:$0xff] 0.0
      %1375 = vst [vmem:[#allocation13 + $0x208] sm:$0xff] 0.0
      %1376 = vst [vmem:[#allocation13 + $0x210] sm:$0xff] 0.0
      %1377 = vst [vmem:[#allocation13 + $0x218] sm:$0xff] 0.0
      %1378 = vst [vmem:[#allocation13 + $0x220] sm:$0xff] 0.0
      %1379 = vst [vmem:[#allocation13 + $0x228] sm:$0xff] 0.0
      %1380 = vst [vmem:[#allocation13 + $0x230] sm:$0xff] 0.0
      %1381 = vst [vmem:[#allocation13 + $0x238] sm:$0xff] 0.0
      %1382 = vst [vmem:[#allocation13 + $0x240] sm:$0xff] 0.0
      %1383 = vst [vmem:[#allocation13 + $0x248] sm:$0xff] 0.0
      %1384 = vst [vmem:[#allocation13 + $0x250] sm:$0xff] 0.0
      %1385 = vst [vmem:[#allocation13 + $0x258] sm:$0xff] 0.0
      %1386 = vst [vmem:[#allocation13 + $0x260] sm:$0xff] 0.0
      %1387 = vst [vmem:[#allocation13 + $0x268] sm:$0xff] 0.0
      %1388 = vst [vmem:[#allocation13 + $0x270] sm:$0xff] 0.0
      %1389 = vst [vmem:[#allocation13 + $0x278] sm:$0xff] 0.0
    $region53: #{tpu_custom_call.1} parent=1 // pred_fallthru
      _
    %v1390 = vld [vmem:[#allocation13] sm:$0xff]
    %v1391 = vld [vmem:[#allocation13 + $0x8] sm:$0xff]
    %v1392 = vld [vmem:[#allocation13 + $0x10] sm:$0xff]
    %v1393 = vld [vmem:[#allocation13 + $0x18] sm:$0xff]
    %v1394 = vld [vmem:[#allocation13 + $0x20] sm:$0xff]
    %v1395 = vld [vmem:[#allocation13 + $0x28] sm:$0xff]
    %v1396 = vld [vmem:[#allocation13 + $0x30] sm:$0xff]
    %v1397 = vld [vmem:[#allocation13 + $0x38] sm:$0xff]
    %v1398 = vld [vmem:[#allocation13 + $0x40] sm:$0xff]
    %v1399 = vld [vmem:[#allocation13 + $0x48] sm:$0xff]
    %v1400 = vld [vmem:[#allocation13 + $0x50] sm:$0xff]
    %v1401 = vld [vmem:[#allocation13 + $0x58] sm:$0xff]
    %v1402 = vld [vmem:[#allocation13 + $0x60] sm:$0xff]
    %v1403 = vld [vmem:[#allocation13 + $0x68] sm:$0xff]
    %v1404 = vld [vmem:[#allocation13 + $0x70] sm:$0xff]
    %v1405 = vld [vmem:[#allocation13 + $0x78] sm:$0xff]
    %v1406 = vld [vmem:[#allocation13 + $0x80] sm:$0xff]
    %v1407 = vld [vmem:[#allocation13 + $0x88] sm:$0xff]
    %v1408 = vld [vmem:[#allocation13 + $0x90] sm:$0xff]
    %v1409 = vld [vmem:[#allocation13 + $0x98] sm:$0xff]
    %v1410 = vld [vmem:[#allocation13 + $0xa0] sm:$0xff]
    %v1411 = vld [vmem:[#allocation13 + $0xa8] sm:$0xff]
    %v1412 = vld [vmem:[#allocation13 + $0xb0] sm:$0xff]
    %v1413 = vld [vmem:[#allocation13 + $0xb8] sm:$0xff]
    %v1414 = vld [vmem:[#allocation13 + $0xc0] sm:$0xff]
    %v1415 = vld [vmem:[#allocation13 + $0xc8] sm:$0xff]
    %v1416 = vld [vmem:[#allocation13 + $0xd0] sm:$0xff]
    %v1417 = vld [vmem:[#allocation13 + $0xd8] sm:$0xff]
    %v1418 = vld [vmem:[#allocation13 + $0xe0] sm:$0xff]
    %v1419 = vld [vmem:[#allocation13 + $0xe8] sm:$0xff]
    %v1420 = vld [vmem:[#allocation13 + $0xf0] sm:$0xff]
    %v1421 = vld [vmem:[#allocation13 + $0xf8] sm:$0xff]
    %v1422 = vld [vmem:[#allocation13 + $0x100] sm:$0xff]
    %v1423 = vld [vmem:[#allocation13 + $0x108] sm:$0xff]
    %v1424 = vld [vmem:[#allocation13 + $0x110] sm:$0xff]
    %v1425 = vld [vmem:[#allocation13 + $0x118] sm:$0xff]
    %v1426 = vld [vmem:[#allocation13 + $0x120] sm:$0xff]
    %v1427 = vld [vmem:[#allocation13 + $0x128] sm:$0xff]
    %v1428 = vld [vmem:[#allocation13 + $0x130] sm:$0xff]
    %v1429 = vld [vmem:[#allocation13 + $0x138] sm:$0xff]
    %v1430 = vld [vmem:[#allocation13 + $0x140] sm:$0xff]
    %v1431 = vld [vmem:[#allocation13 + $0x148] sm:$0xff]
    %v1432 = vld [vmem:[#allocation13 + $0x150] sm:$0xff]
    %v1433 = vld [vmem:[#allocation13 + $0x158] sm:$0xff]
    %v1434 = vld [vmem:[#allocation13 + $0x160] sm:$0xff]
    %v1435 = vld [vmem:[#allocation13 + $0x168] sm:$0xff]
    %v1436 = vld [vmem:[#allocation13 + $0x170] sm:$0xff]
    %v1437 = vld [vmem:[#allocation13 + $0x178] sm:$0xff]
    %v1438 = vld [vmem:[#allocation13 + $0x180] sm:$0xff]
    %v1439 = vld [vmem:[#allocation13 + $0x188] sm:$0xff]
    %v1440 = vld [vmem:[#allocation13 + $0x190] sm:$0xff]
    %v1441 = vld [vmem:[#allocation13 + $0x198] sm:$0xff]
    %v1442 = vld [vmem:[#allocation13 + $0x1a0] sm:$0xff]
    %v1443 = vld [vmem:[#allocation13 + $0x1a8] sm:$0xff]
    %v1444 = vld [vmem:[#allocation13 + $0x1b0] sm:$0xff]
    %v1445 = vld [vmem:[#allocation13 + $0x1b8] sm:$0xff]
    %v1446 = vld [vmem:[#allocation13 + $0x1c0] sm:$0xff]
    %v1447 = vld [vmem:[#allocation13 + $0x1c8] sm:$0xff]
    %v1448 = vld [vmem:[#allocation13 + $0x1d0] sm:$0xff]
    %v1449 = vld [vmem:[#allocation13 + $0x1d8] sm:$0xff]
    %v1450 = vld [vmem:[#allocation13 + $0x1e0] sm:$0xff]
    %v1451 = vld [vmem:[#allocation13 + $0x1e8] sm:$0xff]
    %v1452 = vld [vmem:[#allocation13 + $0x1f0] sm:$0xff]
    %v1453 = vld [vmem:[#allocation13 + $0x1f8] sm:$0xff]
    %v1454 = vld [vmem:[#allocation13 + $0x200] sm:$0xff]
    %v1455 = vld [vmem:[#allocation13 + $0x208] sm:$0xff]
    %v1456 = vld [vmem:[#allocation13 + $0x210] sm:$0xff]
    %v1457 = vld [vmem:[#allocation13 + $0x218] sm:$0xff]
    %v1458 = vld [vmem:[#allocation13 + $0x220] sm:$0xff]
    %v1459 = vld [vmem:[#allocation13 + $0x228] sm:$0xff]
    %v1460 = vld [vmem:[#allocation13 + $0x230] sm:$0xff]
    %v1461 = vld [vmem:[#allocation13 + $0x238] sm:$0xff]
    %v1462 = vld [vmem:[#allocation13 + $0x240] sm:$0xff]
    %v1463 = vld [vmem:[#allocation13 + $0x248] sm:$0xff]
    %v1464 = vld [vmem:[#allocation13 + $0x250] sm:$0xff]
    %v1465 = vld [vmem:[#allocation13 + $0x258] sm:$0xff]
    %v1466 = vld [vmem:[#allocation13 + $0x260] sm:$0xff]
    %v1467 = vld [vmem:[#allocation13 + $0x268] sm:$0xff]
    %v1468 = vld [vmem:[#allocation13 + $0x270] sm:$0xff]
    %v1469 = vld [vmem:[#allocation13 + $0x278] sm:$0xff]
    %s1470 = sshra.s32 %s513, 7
    %s1471 = sand.u32 %s513, 127
    %s1472 = smul.addr %s1470, 4
    %s1473 = scalar_lea.vmem [#allocation2], %s1472
    %v1474 = vld [vmem:[%s1473] sm:$0xff]
    %v1475 = vld [vmem:[%s1473 + $0x8] sm:$0xff]
    %v1476 = vld [vmem:[%s1473 + $0x10] sm:$0xff]
    %v1477 = vld [vmem:[%s1473 + $0x18] sm:$0xff]
    %v1478 = vld [vmem:[%s1473 + $0x20] sm:$0xff]
    %v1479 = vld [vmem:[%s1473 + $0x28] sm:$0xff]
    %v1480 = vld [vmem:[%s1473 + $0x30] sm:$0xff]
    %v1481 = vld [vmem:[%s1473 + $0x38] sm:$0xff]
    %v1482 = vld [vmem:[%s1473 + $0x40] sm:$0xff]
    %v1483 = vld [vmem:[%s1473 + $0x48] sm:$0xff]
    %v1484 = vld [vmem:[%s1473 + $0x50] sm:$0xff]
    %v1485 = vld [vmem:[%s1473 + $0x58] sm:$0xff]
    %v1486 = vld [vmem:[%s1473 + $0x60] sm:$0xff]
    %v1487 = vld [vmem:[%s1473 + $0x68] sm:$0xff]
    %v1488 = vld [vmem:[%s1473 + $0x70] sm:$0xff]
    %v1489 = vld [vmem:[%s1473 + $0x78] sm:$0xff]
    %v1490 = vld [vmem:[#allocation12] sm:$0xff]
    %v1491 = vld [vmem:[#allocation12 + $0x8] sm:$0xff]
    %v1492 = vld [vmem:[#allocation12 + $0x10] sm:$0xf]
    %v1493 = vld [vmem:[#allocation12 + $0x14] sm:$0xff]
    %v1494 = vld [vmem:[#allocation12 + $0x1c] sm:$0xff]
    %v1495 = vld [vmem:[#allocation12 + $0x24] sm:$0xf]
    %v1496 = vld [vmem:[#allocation12 + $0x28] sm:$0xff]
    %v1497 = vld [vmem:[#allocation12 + $0x30] sm:$0xff]
    %v1498 = vld [vmem:[#allocation12 + $0x38] sm:$0xf]
    %v1499 = vld [vmem:[#allocation12 + $0x3c] sm:$0xff]
    %v1500 = vld [vmem:[#allocation12 + $0x44] sm:$0xff]
    %v1501 = vld [vmem:[#allocation12 + $0x4c] sm:$0xf]
    %v1502 = vld [vmem:[#allocation12 + $0x50] sm:$0xff]
    %v1503 = vld [vmem:[#allocation12 + $0x58] sm:$0xff]
    %v1504 = vld [vmem:[#allocation12 + $0x60] sm:$0xf]
    %v1505 = vld [vmem:[#allocation12 + $0x64] sm:$0xff]
    %v1506 = vld [vmem:[#allocation12 + $0x6c] sm:$0xff]
    %v1507 = vld [vmem:[#allocation12 + $0x74] sm:$0xf]
    %v1508 = vld [vmem:[#allocation12 + $0x78] sm:$0xff]
    %v1509 = vld [vmem:[#allocation12 + $0x80] sm:$0xff]
    %v1510 = vld [vmem:[#allocation12 + $0x88] sm:$0xf]
    %v1511 = vld [vmem:[#allocation12 + $0x8c] sm:$0xff]
    %v1512 = vld [vmem:[#allocation12 + $0x94] sm:$0xff]
    %v1513 = vld [vmem:[#allocation12 + $0x9c] sm:$0xf]
    %v1514 = vld [vmem:[#allocation12 + $0xa0] sm:$0xff]
    %v1515 = vld [vmem:[#allocation12 + $0xa8] sm:$0xff]
    %v1516 = vld [vmem:[#allocation12 + $0xb0] sm:$0xf]
    %v1517 = vld [vmem:[#allocation12 + $0xb4] sm:$0xff]
    %v1518 = vld [vmem:[#allocation12 + $0xbc] sm:$0xff]
    %v1519 = vld [vmem:[#allocation12 + $0xc4] sm:$0xf]
    %v1520 = vld [vmem:[#allocation12 + $0xc8] sm:$0xff]
    %v1521 = vld [vmem:[#allocation12 + $0xd0] sm:$0xff]
    %v1522 = vld [vmem:[#allocation12 + $0xd8] sm:$0xf]
    %v1523 = vld [vmem:[#allocation12 + $0xdc] sm:$0xff]
    %v1524 = vld [vmem:[#allocation12 + $0xe4] sm:$0xff]
    %v1525 = vld [vmem:[#allocation12 + $0xec] sm:$0xf]
    %v1526 = vld [vmem:[#allocation12 + $0xf0] sm:$0xff]
    %v1527 = vld [vmem:[#allocation12 + $0xf8] sm:$0xff]
    %v1528 = vld [vmem:[#allocation12 + $0x100] sm:$0xf]
    %v1529 = vld [vmem:[#allocation12 + $0x104] sm:$0xff]
    %v1530 = vld [vmem:[#allocation12 + $0x10c] sm:$0xff]
    %v1531 = vld [vmem:[#allocation12 + $0x114] sm:$0xf]
    %v1532 = vld [vmem:[#allocation12 + $0x118] sm:$0xff]
    %v1533 = vld [vmem:[#allocation12 + $0x120] sm:$0xff]
    %v1534 = vld [vmem:[#allocation12 + $0x128] sm:$0xf]
    %v1535 = vld [vmem:[#allocation12 + $0x12c] sm:$0xff]
    %v1536 = vld [vmem:[#allocation12 + $0x134] sm:$0xff]
    %v1537 = vld [vmem:[#allocation12 + $0x13c] sm:$0xf]
    %v1538 = vld [vmem:[#allocation12 + $0x140] sm:$0xff]
    %v1539 = vld [vmem:[#allocation12 + $0x148] sm:$0xff]
    %v1540 = vld [vmem:[#allocation12 + $0x150] sm:$0xf]
    %v1541 = vld [vmem:[#allocation12 + $0x154] sm:$0xff]
    %v1542 = vld [vmem:[#allocation12 + $0x15c] sm:$0xff]
    %v1543 = vld [vmem:[#allocation12 + $0x164] sm:$0xf]
    %v1544 = vld [vmem:[#allocation12 + $0x168] sm:$0xff]
    %v1545 = vld [vmem:[#allocation12 + $0x170] sm:$0xff]
    %v1546 = vld [vmem:[#allocation12 + $0x178] sm:$0xf]
    %v1547 = vld [vmem:[#allocation12 + $0x17c] sm:$0xff]
    %v1548 = vld [vmem:[#allocation12 + $0x184] sm:$0xff]
    %v1549 = vld [vmem:[#allocation12 + $0x18c] sm:$0xf]
    %v1550 = vld [vmem:[#allocation12 + $0x190] sm:$0xff]
    %v1551 = vld [vmem:[#allocation12 + $0x198] sm:$0xff]
    %v1552 = vld [vmem:[#allocation12 + $0x1a0] sm:$0xf]
    %v1553 = vld [vmem:[#allocation12 + $0x1a4] sm:$0xff]
    %v1554 = vld [vmem:[#allocation12 + $0x1ac] sm:$0xff]
    %v1555 = vld [vmem:[#allocation12 + $0x1b4] sm:$0xf]
    %v1556 = vld [vmem:[#allocation12 + $0x1b8] sm:$0xff]
    %v1557 = vld [vmem:[#allocation12 + $0x1c0] sm:$0xff]
    %v1558 = vld [vmem:[#allocation12 + $0x1c8] sm:$0xf]
    %v1559 = vld [vmem:[#allocation12 + $0x1cc] sm:$0xff]
    %v1560 = vld [vmem:[#allocation12 + $0x1d4] sm:$0xff]
    %v1561 = vld [vmem:[#allocation12 + $0x1dc] sm:$0xf]
    %v1562 = vld [vmem:[#allocation12 + $0x1e0] sm:$0xff]
    %v1563 = vld [vmem:[#allocation12 + $0x1e8] sm:$0xff]
    %v1564 = vld [vmem:[#allocation12 + $0x1f0] sm:$0xf]
    %v1565 = vld [vmem:[#allocation12 + $0x1f4] sm:$0xff]
    %v1566 = vld [vmem:[#allocation12 + $0x1fc] sm:$0xff]
    %v1567 = vld [vmem:[#allocation12 + $0x204] sm:$0xf]
    %v1568 = vld [vmem:[#allocation12 + $0x208] sm:$0xff]
    %v1569 = vld [vmem:[#allocation12 + $0x210] sm:$0xff]
    %v1570 = vld [vmem:[#allocation12 + $0x218] sm:$0xf]
    %v1571 = vld [vmem:[#allocation12 + $0x21c] sm:$0xff]
    %v1572 = vld [vmem:[#allocation12 + $0x224] sm:$0xff]
    %v1573 = vld [vmem:[#allocation12 + $0x22c] sm:$0xf]
    %v1574 = vld [vmem:[#allocation12 + $0x230] sm:$0xff]
    %v1575 = vld [vmem:[#allocation12 + $0x238] sm:$0xff]
    %v1576 = vld [vmem:[#allocation12 + $0x240] sm:$0xf]
    %v1577 = vld [vmem:[#allocation12 + $0x244] sm:$0xff]
    %v1578 = vld [vmem:[#allocation12 + $0x24c] sm:$0xff]
    %v1579 = vld [vmem:[#allocation12 + $0x254] sm:$0xf]
    %v1580 = vld [vmem:[#allocation12 + $0x258] sm:$0xff]
    %v1581 = vld [vmem:[#allocation12 + $0x260] sm:$0xff]
    %v1582 = vld [vmem:[#allocation12 + $0x268] sm:$0xf]
    %v1583 = vld [vmem:[#allocation12 + $0x26c] sm:$0xff]
    %v1584 = vld [vmem:[#allocation12 + $0x274] sm:$0xff]
    %v1585 = vld [vmem:[#allocation12 + $0x27c] sm:$0xf]
    %v1602 = vunpack.c.l.b16 %v1474
    %v1603 = vunpack.c.h.b16 %v1474
    %v1604 = vunpack.c.l.b16 %v1475
    %v1605 = vunpack.c.h.b16 %v1475
    %v1606 = vunpack.c.l.b16 %v1476
    %v1607 = vunpack.c.h.b16 %v1476
    %v1608 = vunpack.c.l.b16 %v1477
    %v1609 = vunpack.c.h.b16 %v1477
    %v1610 = vunpack.c.l.b16 %v1478
    %v1611 = vunpack.c.h.b16 %v1478
    %v1612 = vunpack.c.l.b16 %v1479
    %v1613 = vunpack.c.h.b16 %v1479
    %v1614 = vunpack.c.l.b16 %v1480
    %v1615 = vunpack.c.h.b16 %v1480
    %v1616 = vunpack.c.l.b16 %v1481
    %v1617 = vunpack.c.h.b16 %v1481
    %v1618 = vunpack.c.l.b16 %v1482
    %v1619 = vunpack.c.h.b16 %v1482
    %v1620 = vunpack.c.l.b16 %v1483
    %v1621 = vunpack.c.h.b16 %v1483
    %v1622 = vunpack.c.l.b16 %v1484
    %v1623 = vunpack.c.h.b16 %v1484
    %v1624 = vunpack.c.l.b16 %v1485
    %v1625 = vunpack.c.h.b16 %v1485
    %v1626 = vunpack.c.l.b16 %v1486
    %v1627 = vunpack.c.h.b16 %v1486
    %v1628 = vunpack.c.l.b16 %v1487
    %v1629 = vunpack.c.h.b16 %v1487
    %v1630 = vunpack.c.l.b16 %v1488
    %v1631 = vunpack.c.h.b16 %v1488
    %v1632 = vunpack.c.l.b16 %v1489
    %v1633 = vunpack.c.h.b16 %v1489
    %v1634 = vpack.c.b16 %v1604, %v1602
    %v1635 = vpack.c.b16 %v1605, %v1603
    %v1636 = vpack.c.b16 %v1608, %v1606
    %v1637 = vpack.c.b16 %v1609, %v1607
    %v1638 = vpack.c.b16 %v1612, %v1610
    %v1639 = vpack.c.b16 %v1613, %v1611
    %v1640 = vpack.c.b16 %v1616, %v1614
    %v1641 = vpack.c.b16 %v1617, %v1615
    %v1642 = vpack.c.b16 %v1620, %v1618
    %v1643 = vpack.c.b16 %v1621, %v1619
    %v1644 = vpack.c.b16 %v1624, %v1622
    %v1645 = vpack.c.b16 %v1625, %v1623
    %v1646 = vpack.c.b16 %v1628, %v1626
    %v1647 = vpack.c.b16 %v1629, %v1627
    %v1648 = vpack.c.b16 %v1632, %v1630
    %v1649 = vpack.c.b16 %v1633, %v1631
    %v1762 = vunpack.c.l.b16 %v1490
    %v1763 = vunpack.c.h.b16 %v1490
    %v1764 = vunpack.c.l.b16 %v1491
    %v1765 = vunpack.c.h.b16 %v1491
    %v1766 = vunpack.c.l.b16 %v1492
    %v1767 = vunpack.c.l.b16 %v1493
    %v1768 = vunpack.c.h.b16 %v1493
    %v1769 = vunpack.c.l.b16 %v1494
    %v1770 = vunpack.c.h.b16 %v1494
    %v1771 = vunpack.c.l.b16 %v1495
    %v1772 = vunpack.c.l.b16 %v1496
    %v1773 = vunpack.c.h.b16 %v1496
    %v1774 = vunpack.c.l.b16 %v1497
    %v1775 = vunpack.c.h.b16 %v1497
    %v1776 = vunpack.c.l.b16 %v1498
    %v1777 = vunpack.c.l.b16 %v1499
    %v1778 = vunpack.c.h.b16 %v1499
    %v1779 = vunpack.c.l.b16 %v1500
    %v1780 = vunpack.c.h.b16 %v1500
    %v1781 = vunpack.c.l.b16 %v1501
    %v1782 = vunpack.c.l.b16 %v1502
    %v1783 = vunpack.c.h.b16 %v1502
    %v1784 = vunpack.c.l.b16 %v1503
    %v1785 = vunpack.c.h.b16 %v1503
    %v1786 = vunpack.c.l.b16 %v1504
    %v1787 = vunpack.c.l.b16 %v1505
    %v1788 = vunpack.c.h.b16 %v1505
    %v1789 = vunpack.c.l.b16 %v1506
    %v1790 = vunpack.c.h.b16 %v1506
    %v1791 = vunpack.c.l.b16 %v1507
    %v1792 = vunpack.c.l.b16 %v1508
    %v1793 = vunpack.c.h.b16 %v1508
    %v1794 = vunpack.c.l.b16 %v1509
    %v1795 = vunpack.c.h.b16 %v1509
    %v1796 = vunpack.c.l.b16 %v1510
    %v1797 = vunpack.c.l.b16 %v1511
    %v1798 = vunpack.c.h.b16 %v1511
    %v1799 = vunpack.c.l.b16 %v1512
    %v1800 = vunpack.c.h.b16 %v1512
    %v1801 = vunpack.c.l.b16 %v1513
    %v1802 = vunpack.c.l.b16 %v1514
    %v1803 = vunpack.c.h.b16 %v1514
    %v1804 = vunpack.c.l.b16 %v1515
    %v1805 = vunpack.c.h.b16 %v1515
    %v1806 = vunpack.c.l.b16 %v1516
    %v1807 = vunpack.c.l.b16 %v1517
    %v1808 = vunpack.c.h.b16 %v1517
    %v1809 = vunpack.c.l.b16 %v1518
    %v1810 = vunpack.c.h.b16 %v1518
    %v1811 = vunpack.c.l.b16 %v1519
    %v1812 = vunpack.c.l.b16 %v1520
    %v1813 = vunpack.c.h.b16 %v1520
    %v1814 = vunpack.c.l.b16 %v1521
    %v1815 = vunpack.c.h.b16 %v1521
    %v1816 = vunpack.c.l.b16 %v1522
    %v1817 = vunpack.c.l.b16 %v1523
    %v1818 = vunpack.c.h.b16 %v1523
    %v1819 = vunpack.c.l.b16 %v1524
    %v1820 = vunpack.c.h.b16 %v1524
    %v1821 = vunpack.c.l.b16 %v1525
    %v1822 = vunpack.c.l.b16 %v1526
    %v1823 = vunpack.c.h.b16 %v1526
    %v1824 = vunpack.c.l.b16 %v1527
    %v1825 = vunpack.c.h.b16 %v1527
    %v1826 = vunpack.c.l.b16 %v1528
    %v1827 = vunpack.c.l.b16 %v1529
    %v1828 = vunpack.c.h.b16 %v1529
    %v1829 = vunpack.c.l.b16 %v1530
    %v1830 = vunpack.c.h.b16 %v1530
    %v1831 = vunpack.c.l.b16 %v1531
    %v1832 = vunpack.c.l.b16 %v1532
    %v1833 = vunpack.c.h.b16 %v1532
    %v1834 = vunpack.c.l.b16 %v1533
    %v1835 = vunpack.c.h.b16 %v1533
    %v1836 = vunpack.c.l.b16 %v1534
    %v1837 = vunpack.c.l.b16 %v1535
    %v1838 = vunpack.c.h.b16 %v1535
    %v1839 = vunpack.c.l.b16 %v1536
    %v1840 = vunpack.c.h.b16 %v1536
    %v1841 = vunpack.c.l.b16 %v1537
    %v1842 = vunpack.c.l.b16 %v1538
    %v1843 = vunpack.c.h.b16 %v1538
    %v1844 = vunpack.c.l.b16 %v1539
    %v1845 = vunpack.c.h.b16 %v1539
    %v1846 = vunpack.c.l.b16 %v1540
    %v1847 = vunpack.c.l.b16 %v1541
    %v1848 = vunpack.c.h.b16 %v1541
    %v1849 = vunpack.c.l.b16 %v1542
    %v1850 = vunpack.c.h.b16 %v1542
    %v1851 = vunpack.c.l.b16 %v1543
    %v1852 = vunpack.c.l.b16 %v1544
    %v1853 = vunpack.c.h.b16 %v1544
    %v1854 = vunpack.c.l.b16 %v1545
    %v1855 = vunpack.c.h.b16 %v1545
    %v1856 = vunpack.c.l.b16 %v1546
    %v1857 = vunpack.c.l.b16 %v1547
    %v1858 = vunpack.c.h.b16 %v1547
    %v1859 = vunpack.c.l.b16 %v1548
    %v1860 = vunpack.c.h.b16 %v1548
    %v1861 = vunpack.c.l.b16 %v1549
    %v1862 = vunpack.c.l.b16 %v1550
    %v1863 = vunpack.c.h.b16 %v1550
    %v1864 = vunpack.c.l.b16 %v1551
    %v1865 = vunpack.c.h.b16 %v1551
    %v1866 = vunpack.c.l.b16 %v1552
    %v1867 = vunpack.c.l.b16 %v1553
    %v1868 = vunpack.c.h.b16 %v1553
    %v1869 = vunpack.c.l.b16 %v1554
    %v1870 = vunpack.c.h.b16 %v1554
    %v1871 = vunpack.c.l.b16 %v1555
    %v1872 = vunpack.c.l.b16 %v1556
    %v1873 = vunpack.c.h.b16 %v1556
    %v1874 = vunpack.c.l.b16 %v1557
    %v1875 = vunpack.c.h.b16 %v1557
    %v1876 = vunpack.c.l.b16 %v1558
    %v1877 = vunpack.c.l.b16 %v1559
    %v1878 = vunpack.c.h.b16 %v1559
    %v1879 = vunpack.c.l.b16 %v1560
    %v1880 = vunpack.c.h.b16 %v1560
    %v1881 = vunpack.c.l.b16 %v1561
    %v1882 = vunpack.c.l.b16 %v1562
    %v1883 = vunpack.c.h.b16 %v1562
    %v1884 = vunpack.c.l.b16 %v1563
    %v1885 = vunpack.c.h.b16 %v1563
    %v1886 = vunpack.c.l.b16 %v1564
    %v1887 = vunpack.c.l.b16 %v1565
    %v1888 = vunpack.c.h.b16 %v1565
    %v1889 = vunpack.c.l.b16 %v1566
    %v1890 = vunpack.c.h.b16 %v1566
    %v1891 = vunpack.c.l.b16 %v1567
    %v1892 = vunpack.c.l.b16 %v1568
    %v1893 = vunpack.c.h.b16 %v1568
    %v1894 = vunpack.c.l.b16 %v1569
    %v1895 = vunpack.c.h.b16 %v1569
    %v1896 = vunpack.c.l.b16 %v1570
    %v1897 = vunpack.c.l.b16 %v1571
    %v1898 = vunpack.c.h.b16 %v1571
    %v1899 = vunpack.c.l.b16 %v1572
    %v1900 = vunpack.c.h.b16 %v1572
    %v1901 = vunpack.c.l.b16 %v1573
    %v1902 = vunpack.c.l.b16 %v1574
    %v1903 = vunpack.c.h.b16 %v1574
    %v1904 = vunpack.c.l.b16 %v1575
    %v1905 = vunpack.c.h.b16 %v1575
    %v1906 = vunpack.c.l.b16 %v1576
    %v1907 = vunpack.c.l.b16 %v1577
    %v1908 = vunpack.c.h.b16 %v1577
    %v1909 = vunpack.c.l.b16 %v1578
    %v1910 = vunpack.c.h.b16 %v1578
    %v1911 = vunpack.c.l.b16 %v1579
    %v1912 = vunpack.c.l.b16 %v1580
    %v1913 = vunpack.c.h.b16 %v1580
    %v1914 = vunpack.c.l.b16 %v1581
    %v1915 = vunpack.c.h.b16 %v1581
    %v1916 = vunpack.c.l.b16 %v1582
    %v1917 = vunpack.c.l.b16 %v1583
    %v1918 = vunpack.c.h.b16 %v1583
    %v1919 = vunpack.c.l.b16 %v1584
    %v1920 = vunpack.c.h.b16 %v1584
    %v1921 = vunpack.c.l.b16 %v1585
    %v1922 = vpack.c.b16 %v1767, %v1762
    %v1923 = vpack.c.b16 %v1768, %v1763
    %v1924 = vpack.c.b16 %v1769, %v1764
    %v1925 = vpack.c.b16 %v1770, %v1765
    %v1926 = vpack.c.b16 %v1771, %v1766
    %v1927 = vpack.c.b16 %v1777, %v1772
    %v1928 = vpack.c.b16 %v1778, %v1773
    %v1929 = vpack.c.b16 %v1779, %v1774
    %v1930 = vpack.c.b16 %v1780, %v1775
    %v1931 = vpack.c.b16 %v1781, %v1776
    %v1932 = vpack.c.b16 %v1787, %v1782
    %v1933 = vpack.c.b16 %v1788, %v1783
    %v1934 = vpack.c.b16 %v1789, %v1784
    %v1935 = vpack.c.b16 %v1790, %v1785
    %v1936 = vpack.c.b16 %v1791, %v1786
    %v1937 = vpack.c.b16 %v1797, %v1792
    %v1938 = vpack.c.b16 %v1798, %v1793
    %v1939 = vpack.c.b16 %v1799, %v1794
    %v1940 = vpack.c.b16 %v1800, %v1795
    %v1941 = vpack.c.b16 %v1801, %v1796
    %v1942 = vpack.c.b16 %v1807, %v1802
    %v1943 = vpack.c.b16 %v1808, %v1803
    %v1944 = vpack.c.b16 %v1809, %v1804
    %v1945 = vpack.c.b16 %v1810, %v1805
    %v1946 = vpack.c.b16 %v1811, %v1806
    %v1947 = vpack.c.b16 %v1817, %v1812
    %v1948 = vpack.c.b16 %v1818, %v1813
    %v1949 = vpack.c.b16 %v1819, %v1814
    %v1950 = vpack.c.b16 %v1820, %v1815
    %v1951 = vpack.c.b16 %v1821, %v1816
    %v1952 = vpack.c.b16 %v1827, %v1822
    %v1953 = vpack.c.b16 %v1828, %v1823
    %v1954 = vpack.c.b16 %v1829, %v1824
    %v1955 = vpack.c.b16 %v1830, %v1825
    %v1956 = vpack.c.b16 %v1831, %v1826
    %v1957 = vpack.c.b16 %v1837, %v1832
    %v1958 = vpack.c.b16 %v1838, %v1833
    %v1959 = vpack.c.b16 %v1839, %v1834
    %v1960 = vpack.c.b16 %v1840, %v1835
    %v1961 = vpack.c.b16 %v1841, %v1836
    %v1962 = vpack.c.b16 %v1847, %v1842
    %v1963 = vpack.c.b16 %v1848, %v1843
    %v1964 = vpack.c.b16 %v1849, %v1844
    %v1965 = vpack.c.b16 %v1850, %v1845
    %v1966 = vpack.c.b16 %v1851, %v1846
    %v1967 = vpack.c.b16 %v1857, %v1852
    %v1968 = vpack.c.b16 %v1858, %v1853
    %v1969 = vpack.c.b16 %v1859, %v1854
    %v1970 = vpack.c.b16 %v1860, %v1855
    %v1971 = vpack.c.b16 %v1861, %v1856
    %v1972 = vpack.c.b16 %v1867, %v1862
    %v1973 = vpack.c.b16 %v1868, %v1863
    %v1974 = vpack.c.b16 %v1869, %v1864
    %v1975 = vpack.c.b16 %v1870, %v1865
    %v1976 = vpack.c.b16 %v1871, %v1866
    %v1977 = vpack.c.b16 %v1877, %v1872
    %v1978 = vpack.c.b16 %v1878, %v1873
    %v1979 = vpack.c.b16 %v1879, %v1874
    %v1980 = vpack.c.b16 %v1880, %v1875
    %v1981 = vpack.c.b16 %v1881, %v1876
    %v1982 = vpack.c.b16 %v1887, %v1882
    %v1983 = vpack.c.b16 %v1888, %v1883
    %v1984 = vpack.c.b16 %v1889, %v1884
    %v1985 = vpack.c.b16 %v1890, %v1885
    %v1986 = vpack.c.b16 %v1891, %v1886
    %v1987 = vpack.c.b16 %v1897, %v1892
    %v1988 = vpack.c.b16 %v1898, %v1893
    %v1989 = vpack.c.b16 %v1899, %v1894
    %v1990 = vpack.c.b16 %v1900, %v1895
    %v1991 = vpack.c.b16 %v1901, %v1896
    %v1992 = vpack.c.b16 %v1907, %v1902
    %v1993 = vpack.c.b16 %v1908, %v1903
    %v1994 = vpack.c.b16 %v1909, %v1904
    %v1995 = vpack.c.b16 %v1910, %v1905
    %v1996 = vpack.c.b16 %v1911, %v1906
    %v1997 = vpack.c.b16 %v1917, %v1912
    %v1998 = vpack.c.b16 %v1918, %v1913
    %v1999 = vpack.c.b16 %v1919, %v1914
    %v2000 = vpack.c.b16 %v1920, %v1915
    %v2001 = vpack.c.b16 %v1921, %v1916
    %2082 = vmatprep.subr.bf16.mxu0 %v1958
    %2083 = vmatpush1.bf16.msra.mxu0 %v1957
    %2084 = vmatprep.subr.bf16.mxu0 %v1953
    %2085 = vmatpush1.bf16.msra.mxu0 %v1952
    %2086 = vmatprep.subr.bf16.mxu0 %v1948
    %2087 = vmatpush1.bf16.msra.mxu0 %v1947
    %2088 = vmatprep.subr.bf16.mxu0 %v1943
    %2089 = vmatpush1.bf16.msra.mxu0 %v1942
    %2090 = vmatprep.subr.bf16.mxu0 %v1938
    %2091 = vmatpush1.bf16.msra.mxu0 %v1937
    %2092 = vmatprep.subr.bf16.mxu0 %v1933
    %2093 = vmatpush1.bf16.msra.mxu0 %v1932
    %2094 = vmatprep.subr.bf16.mxu0 %v1928
    %2095 = vmatpush1.bf16.msra.mxu0 %v1927
    %2096 = vmatprep.subr.bf16.mxu0 %v1923
    %2097 = vmatpush1.bf16.msra.mxu0 %v1922
    %2098 = vmatprep.subr.bf16.mxu0 %v1998
    %2099 = vmatpush2.bf16.msra.mxu0 %v1997
    %2100 = vmatprep.subr.bf16.mxu0 %v1993
    %2101 = vmatpush2.bf16.msra.mxu0 %v1992
    %2102 = vmatprep.subr.bf16.mxu0 %v1988
    %2103 = vmatpush2.bf16.msra.mxu0 %v1987
    %2104 = vmatprep.subr.bf16.mxu0 %v1983
    %2105 = vmatpush2.bf16.msra.mxu0 %v1982
    %2106 = vmatprep.subr.bf16.mxu0 %v1978
    %2107 = vmatpush2.bf16.msra.mxu0 %v1977
    %2108 = vmatprep.subr.bf16.mxu0 %v1973
    %2109 = vmatpush2.bf16.msra.mxu0 %v1972
    %2110 = vmatprep.subr.bf16.mxu0 %v1968
    %2111 = vmatpush2.bf16.msra.mxu0 %v1967
    %2112 = vmatprep.subr.bf16.mxu0 %v1963
    %2113 = vmatpush2.bf16.msra.mxu0 %v1962
    %2114 = vmatprep.mubr.bf16.mxu0 %v1635
    %2115 = vmatmul.mubr.bf16.gmra.mxu0 %v1634
    %v2116 = vpop.f32.mrf.mxu0
    %v2117 = vadd.f32 0.0, %v2116
    %v2118 = vpop.f32.mrf.mxu0
    %v2119 = vadd.f32 0.0, %v2118
    %v2120 = vpop.f32.mrf.mxu0
    %v2121 = vadd.f32 0.0, %v2120
    %v2122 = vpop.f32.mrf.mxu0
    %v2123 = vadd.f32 0.0, %v2122
    %2124 = vmatprep.mubr.bf16.mxu0 %v1637
    %2125 = vmatmul.mubr.bf16.gmra.mxu0 %v1636
    %v2126 = vpop.f32.mrf.mxu0
    %v2127 = vadd.f32 0.0, %v2126
    %v2128 = vpop.f32.mrf.mxu0
    %v2129 = vadd.f32 0.0, %v2128
    %v2130 = vpop.f32.mrf.mxu0
    %v2131 = vadd.f32 0.0, %v2130
    %v2132 = vpop.f32.mrf.mxu0
    %v2133 = vadd.f32 0.0, %v2132
    %2134 = vmatprep.mubr.bf16.mxu0 %v1639
    %2135 = vmatmul.mubr.bf16.gmra.mxu0 %v1638
    %v2136 = vpop.f32.mrf.mxu0
    %v2137 = vadd.f32 0.0, %v2136
    %v2138 = vpop.f32.mrf.mxu0
    %v2139 = vadd.f32 0.0, %v2138
    %v2140 = vpop.f32.mrf.mxu0
    %v2141 = vadd.f32 0.0, %v2140
    %v2142 = vpop.f32.mrf.mxu0
    %v2143 = vadd.f32 0.0, %v2142
    %2144 = vmatprep.mubr.bf16.mxu0 %v1641
    %2145 = vmatmul.mubr.bf16.gmra.mxu0 %v1640
    %v2146 = vpop.f32.mrf.mxu0
    %v2147 = vadd.f32 0.0, %v2146
    %v2148 = vpop.f32.mrf.mxu0
    %v2149 = vadd.f32 0.0, %v2148
    %v2150 = vpop.f32.mrf.mxu0
    %v2151 = vadd.f32 0.0, %v2150
    %v2152 = vpop.f32.mrf.mxu0
    %v2153 = vadd.f32 0.0, %v2152
    %2154 = vmatprep.mubr.bf16.mxu0 %v1643
    %2155 = vmatmul.mubr.bf16.gmra.mxu0 %v1642
    %v2156 = vpop.f32.mrf.mxu0
    %v2157 = vadd.f32 0.0, %v2156
    %v2158 = vpop.f32.mrf.mxu0
    %v2159 = vadd.f32 0.0, %v2158
    %v2160 = vpop.f32.mrf.mxu0
    %v2161 = vadd.f32 0.0, %v2160
    %v2162 = vpop.f32.mrf.mxu0
    %v2163 = vadd.f32 0.0, %v2162
    %2164 = vmatprep.mubr.bf16.mxu0 %v1645
    %2165 = vmatmul.mubr.bf16.gmra.mxu0 %v1644
    %v2166 = vpop.f32.mrf.mxu0
    %v2167 = vadd.f32 0.0, %v2166
    %v2168 = vpop.f32.mrf.mxu0
    %v2169 = vadd.f32 0.0, %v2168
    %v2170 = vpop.f32.mrf.mxu0
    %v2171 = vadd.f32 0.0, %v2170
    %v2172 = vpop.f32.mrf.mxu0
    %v2173 = vadd.f32 0.0, %v2172
    %2174 = vmatprep.mubr.bf16.mxu0 %v1647
    %2175 = vmatmul.mubr.bf16.gmra.mxu0 %v1646
    %v2176 = vpop.f32.mrf.mxu0
    %v2177 = vadd.f32 0.0, %v2176
    %v2178 = vpop.f32.mrf.mxu0
    %v2179 = vadd.f32 0.0, %v2178
    %v2180 = vpop.f32.mrf.mxu0
    %v2181 = vadd.f32 0.0, %v2180
    %v2182 = vpop.f32.mrf.mxu0
    %v2183 = vadd.f32 0.0, %v2182
    %2184 = vmatprep.mubr.bf16.mxu0 %v1649
    %2185 = vmatmul.mubr.bf16.gmra.mxu0 %v1648
    %v2186 = vpop.f32.mrf.mxu0
    %v2187 = vadd.f32 0.0, %v2186
    %v2188 = vpop.f32.mrf.mxu0
    %v2189 = vadd.f32 0.0, %v2188
    %v2190 = vpop.f32.mrf.mxu0
    %v2191 = vadd.f32 0.0, %v2190
    %v2192 = vpop.f32.mrf.mxu0
    %v2193 = vadd.f32 0.0, %v2192
    %2194 = vdwg.mxu0
    %2195 = vmatprep.subr.bf16.mxu0 %v1960
    %2196 = vmatpush1.bf16.msra.mxu0 %v1959
    %2197 = vmatprep.subr.bf16.mxu0 %v1955
    %2198 = vmatpush1.bf16.msra.mxu0 %v1954
    %2199 = vmatprep.subr.bf16.mxu0 %v1950
    %2200 = vmatpush1.bf16.msra.mxu0 %v1949
    %2201 = vmatprep.subr.bf16.mxu0 %v1945
    %2202 = vmatpush1.bf16.msra.mxu0 %v1944
    %2203 = vmatprep.subr.bf16.mxu0 %v1940
    %2204 = vmatpush1.bf16.msra.mxu0 %v1939
    %2205 = vmatprep.subr.bf16.mxu0 %v1935
    %2206 = vmatpush1.bf16.msra.mxu0 %v1934
    %2207 = vmatprep.subr.bf16.mxu0 %v1930
    %2208 = vmatpush1.bf16.msra.mxu0 %v1929
    %2209 = vmatprep.subr.bf16.mxu0 %v1925
    %2210 = vmatpush1.bf16.msra.mxu0 %v1924
    %2211 = vmatprep.subr.bf16.mxu0 %v2000
    %2212 = vmatpush2.bf16.msra.mxu0 %v1999
    %2213 = vmatprep.subr.bf16.mxu0 %v1995
    %2214 = vmatpush2.bf16.msra.mxu0 %v1994
    %2215 = vmatprep.subr.bf16.mxu0 %v1990
    %2216 = vmatpush2.bf16.msra.mxu0 %v1989
    %2217 = vmatprep.subr.bf16.mxu0 %v1985
    %2218 = vmatpush2.bf16.msra.mxu0 %v1984
    %2219 = vmatprep.subr.bf16.mxu0 %v1980
    %2220 = vmatpush2.bf16.msra.mxu0 %v1979
    %2221 = vmatprep.subr.bf16.mxu0 %v1975
    %2222 = vmatpush2.bf16.msra.mxu0 %v1974
    %2223 = vmatprep.subr.bf16.mxu0 %v1970
    %2224 = vmatpush2.bf16.msra.mxu0 %v1969
    %2225 = vmatprep.subr.bf16.mxu0 %v1965
    %2226 = vmatpush2.bf16.msra.mxu0 %v1964
    %2227 = vmatprep.mubr.bf16.mxu0 %v1635
    %2228 = vmatmul.mubr.bf16.gmra.mxu0 %v1634
    %v2229 = vpop.f32.mrf.mxu0
    %v2230 = vadd.f32 0.0, %v2229
    %v2231 = vpop.f32.mrf.mxu0
    %v2232 = vadd.f32 0.0, %v2231
    %v2233 = vpop.f32.mrf.mxu0
    %v2234 = vadd.f32 0.0, %v2233
    %v2235 = vpop.f32.mrf.mxu0
    %v2236 = vadd.f32 0.0, %v2235
    %2237 = vmatprep.mubr.bf16.mxu0 %v1637
    %2238 = vmatmul.mubr.bf16.gmra.mxu0 %v1636
    %v2239 = vpop.f32.mrf.mxu0
    %v2240 = vadd.f32 0.0, %v2239
    %v2241 = vpop.f32.mrf.mxu0
    %v2242 = vadd.f32 0.0, %v2241
    %v2243 = vpop.f32.mrf.mxu0
    %v2244 = vadd.f32 0.0, %v2243
    %v2245 = vpop.f32.mrf.mxu0
    %v2246 = vadd.f32 0.0, %v2245
    %2247 = vmatprep.mubr.bf16.mxu0 %v1639
    %2248 = vmatmul.mubr.bf16.gmra.mxu0 %v1638
    %v2249 = vpop.f32.mrf.mxu0
    %v2250 = vadd.f32 0.0, %v2249
    %v2251 = vpop.f32.mrf.mxu0
    %v2252 = vadd.f32 0.0, %v2251
    %v2253 = vpop.f32.mrf.mxu0
    %v2254 = vadd.f32 0.0, %v2253
    %v2255 = vpop.f32.mrf.mxu0
    %v2256 = vadd.f32 0.0, %v2255
    %2257 = vmatprep.mubr.bf16.mxu0 %v1641
    %2258 = vmatmul.mubr.bf16.gmra.mxu0 %v1640
    %v2259 = vpop.f32.mrf.mxu0
    %v2260 = vadd.f32 0.0, %v2259
    %v2261 = vpop.f32.mrf.mxu0
    %v2262 = vadd.f32 0.0, %v2261
    %v2263 = vpop.f32.mrf.mxu0
    %v2264 = vadd.f32 0.0, %v2263
    %v2265 = vpop.f32.mrf.mxu0
    %v2266 = vadd.f32 0.0, %v2265
    %2267 = vmatprep.mubr.bf16.mxu0 %v1643
    %2268 = vmatmul.mubr.bf16.gmra.mxu0 %v1642
    %v2269 = vpop.f32.mrf.mxu0
    %v2270 = vadd.f32 0.0, %v2269
    %v2271 = vpop.f32.mrf.mxu0
    %v2272 = vadd.f32 0.0, %v2271
    %v2273 = vpop.f32.mrf.mxu0
    %v2274 = vadd.f32 0.0, %v2273
    %v2275 = vpop.f32.mrf.mxu0
    %v2276 = vadd.f32 0.0, %v2275
    %2277 = vmatprep.mubr.bf16.mxu0 %v1645
    %2278 = vmatmul.mubr.bf16.gmra.mxu0 %v1644
    %v2279 = vpop.f32.mrf.mxu0
    %v2280 = vadd.f32 0.0, %v2279
    %v2281 = vpop.f32.mrf.mxu0
    %v2282 = vadd.f32 0.0, %v2281
    %v2283 = vpop.f32.mrf.mxu0
    %v2284 = vadd.f32 0.0, %v2283
    %v2285 = vpop.f32.mrf.mxu0
    %v2286 = vadd.f32 0.0, %v2285
    %2287 = vmatprep.mubr.bf16.mxu0 %v1647
    %2288 = vmatmul.mubr.bf16.gmra.mxu0 %v1646
    %v2289 = vpop.f32.mrf.mxu0
    %v2290 = vadd.f32 0.0, %v2289
    %v2291 = vpop.f32.mrf.mxu0
    %v2292 = vadd.f32 0.0, %v2291
    %v2293 = vpop.f32.mrf.mxu0
    %v2294 = vadd.f32 0.0, %v2293
    %v2295 = vpop.f32.mrf.mxu0
    %v2296 = vadd.f32 0.0, %v2295
    %2297 = vmatprep.mubr.bf16.mxu0 %v1649
    %2298 = vmatmul.mubr.bf16.gmra.mxu0 %v1648
    %v2299 = vpop.f32.mrf.mxu0
    %v2300 = vadd.f32 0.0, %v2299
    %v2301 = vpop.f32.mrf.mxu0
    %v2302 = vadd.f32 0.0, %v2301
    %v2303 = vpop.f32.mrf.mxu0
    %v2304 = vadd.f32 0.0, %v2303
    %v2305 = vpop.f32.mrf.mxu0
    %v2306 = vadd.f32 0.0, %v2305
    %2307 = vdwg.mxu0
    %2308 = vmatprep.subr.bf16.mxu0 0
    %2309 = vmatpush1.bf16.msra.mxu0 %v1961
    %2310 = vmatprep.subr.bf16.mxu0 0
    %2311 = vmatpush1.bf16.msra.mxu0 %v1956
    %2312 = vmatprep.subr.bf16.mxu0 0
    %2313 = vmatpush1.bf16.msra.mxu0 %v1951
    %2314 = vmatprep.subr.bf16.mxu0 0
    %2315 = vmatpush1.bf16.msra.mxu0 %v1946
    %2316 = vmatprep.subr.bf16.mxu0 0
    %2317 = vmatpush1.bf16.msra.mxu0 %v1941
    %2318 = vmatprep.subr.bf16.mxu0 0
    %2319 = vmatpush1.bf16.msra.mxu0 %v1936
    %2320 = vmatprep.subr.bf16.mxu0 0
    %2321 = vmatpush1.bf16.msra.mxu0 %v1931
    %2322 = vmatprep.subr.bf16.mxu0 0
    %2323 = vmatpush1.bf16.msra.mxu0 %v1926
    %2324 = vmatprep.subr.bf16.mxu0 0
    %2325 = vmatpush2.bf16.msra.mxu0 %v2001
    %2326 = vmatprep.subr.bf16.mxu0 0
    %2327 = vmatpush2.bf16.msra.mxu0 %v1996
    %2328 = vmatprep.subr.bf16.mxu0 0
    %2329 = vmatpush2.bf16.msra.mxu0 %v1991
    %2330 = vmatprep.subr.bf16.mxu0 0
    %2331 = vmatpush2.bf16.msra.mxu0 %v1986
    %2332 = vmatprep.subr.bf16.mxu0 0
    %2333 = vmatpush2.bf16.msra.mxu0 %v1981
    %2334 = vmatprep.subr.bf16.mxu0 0
    %2335 = vmatpush2.bf16.msra.mxu0 %v1976
    %2336 = vmatprep.subr.bf16.mxu0 0
    %2337 = vmatpush2.bf16.msra.mxu0 %v1971
    %2338 = vmatprep.subr.bf16.mxu0 0
    %2339 = vmatpush2.bf16.msra.mxu0 %v1966
    %2340 = vmatprep.mubr.bf16.mxu0 %v1635
    %2341 = vmatmul.mubr.bf16.gmra.mxu0 %v1634
    %v2342 = vpop.f32.mrf.mxu0
    %v2343 = vadd.f32 0.0, %v2342
    %v2344 = vpop.f32.mrf.mxu0
    %v2345 = vpop.f32.mrf.mxu0
    %v2346 = vadd.f32 0.0, %v2345
    %v2347 = vpop.f32.mrf.mxu0
    %2348 = vmatprep.mubr.bf16.mxu0 %v1637
    %2349 = vmatmul.mubr.bf16.gmra.mxu0 %v1636
    %v2350 = vpop.f32.mrf.mxu0
    %v2351 = vadd.f32 0.0, %v2350
    %v2352 = vpop.f32.mrf.mxu0
    %v2353 = vpop.f32.mrf.mxu0
    %v2354 = vadd.f32 0.0, %v2353
    %v2355 = vpop.f32.mrf.mxu0
    %2356 = vmatprep.mubr.bf16.mxu0 %v1639
    %2357 = vmatmul.mubr.bf16.gmra.mxu0 %v1638
    %v2358 = vpop.f32.mrf.mxu0
    %v2359 = vadd.f32 0.0, %v2358
    %v2360 = vpop.f32.mrf.mxu0
    %v2361 = vpop.f32.mrf.mxu0
    %v2362 = vadd.f32 0.0, %v2361
    %v2363 = vpop.f32.mrf.mxu0
    %2364 = vmatprep.mubr.bf16.mxu0 %v1641
    %2365 = vmatmul.mubr.bf16.gmra.mxu0 %v1640
    %v2366 = vpop.f32.mrf.mxu0
    %v2367 = vadd.f32 0.0, %v2366
    %v2368 = vpop.f32.mrf.mxu0
    %v2369 = vpop.f32.mrf.mxu0
    %v2370 = vadd.f32 0.0, %v2369
    %v2371 = vpop.f32.mrf.mxu0
    %2372 = vmatprep.mubr.bf16.mxu0 %v1643
    %2373 = vmatmul.mubr.bf16.gmra.mxu0 %v1642
    %v2374 = vpop.f32.mrf.mxu0
    %v2375 = vadd.f32 0.0, %v2374
    %v2376 = vpop.f32.mrf.mxu0
    %v2377 = vpop.f32.mrf.mxu0
    %v2378 = vadd.f32 0.0, %v2377
    %v2379 = vpop.f32.mrf.mxu0
    %2380 = vmatprep.mubr.bf16.mxu0 %v1645
    %2381 = vmatmul.mubr.bf16.gmra.mxu0 %v1644
    %v2382 = vpop.f32.mrf.mxu0
    %v2383 = vadd.f32 0.0, %v2382
    %v2384 = vpop.f32.mrf.mxu0
    %v2385 = vpop.f32.mrf.mxu0
    %v2386 = vadd.f32 0.0, %v2385
    %v2387 = vpop.f32.mrf.mxu0
    %2388 = vmatprep.mubr.bf16.mxu0 %v1647
    %2389 = vmatmul.mubr.bf16.gmra.mxu0 %v1646
    %v2390 = vpop.f32.mrf.mxu0
    %v2391 = vadd.f32 0.0, %v2390
    %v2392 = vpop.f32.mrf.mxu0
    %v2393 = vpop.f32.mrf.mxu0
    %v2394 = vadd.f32 0.0, %v2393
    %v2395 = vpop.f32.mrf.mxu0
    %2396 = vmatprep.mubr.bf16.mxu0 %v1649
    %2397 = vmatmul.mubr.bf16.gmra.mxu0 %v1648
    %v2398 = vpop.f32.mrf.mxu0
    %v2399 = vadd.f32 0.0, %v2398
    %v2400 = vpop.f32.mrf.mxu0
    %v2401 = vpop.f32.mrf.mxu0
    %v2402 = vadd.f32 0.0, %v2401
    %v2403 = vpop.f32.mrf.mxu0
    %2404 = vdwg.mxu0
    %v2405 = vadd.f32 %v1390, %v2117
    %v2406 = vadd.f32 %v1391, %v2119
    %v2407 = vadd.f32 %v1392, %v2230
    %v2408 = vadd.f32 %v1393, %v2232
    %v2409 = vadd.f32 %v1394, %v2343
    %v2410 = vadd.f32 %v1395, %v2121
    %v2411 = vadd.f32 %v1396, %v2123
    %v2412 = vadd.f32 %v1397, %v2234
    %v2413 = vadd.f32 %v1398, %v2236
    %v2414 = vadd.f32 %v1399, %v2346
    %v2415 = vadd.f32 %v1400, %v2127
    %v2416 = vadd.f32 %v1401, %v2129
    %v2417 = vadd.f32 %v1402, %v2240
    %v2418 = vadd.f32 %v1403, %v2242
    %v2419 = vadd.f32 %v1404, %v2351
    %v2420 = vadd.f32 %v1405, %v2131
    %v2421 = vadd.f32 %v1406, %v2133
    %v2422 = vadd.f32 %v1407, %v2244
    %v2423 = vadd.f32 %v1408, %v2246
    %v2424 = vadd.f32 %v1409, %v2354
    %v2425 = vadd.f32 %v1410, %v2137
    %v2426 = vadd.f32 %v1411, %v2139
    %v2427 = vadd.f32 %v1412, %v2250
    %v2428 = vadd.f32 %v1413, %v2252
    %v2429 = vadd.f32 %v1414, %v2359
    %v2430 = vadd.f32 %v1415, %v2141
    %v2431 = vadd.f32 %v1416, %v2143
    %v2432 = vadd.f32 %v1417, %v2254
    %v2433 = vadd.f32 %v1418, %v2256
    %v2434 = vadd.f32 %v1419, %v2362
    %v2435 = vadd.f32 %v1420, %v2147
    %v2436 = vadd.f32 %v1421, %v2149
    %v2437 = vadd.f32 %v1422, %v2260
    %v2438 = vadd.f32 %v1423, %v2262
    %v2439 = vadd.f32 %v1424, %v2367
    %v2440 = vadd.f32 %v1425, %v2151
    %v2441 = vadd.f32 %v1426, %v2153
    %v2442 = vadd.f32 %v1427, %v2264
    %v2443 = vadd.f32 %v1428, %v2266
    %v2444 = vadd.f32 %v1429, %v2370
    %v2445 = vadd.f32 %v1430, %v2157
    %v2446 = vadd.f32 %v1431, %v2159
    %v2447 = vadd.f32 %v1432, %v2270
    %v2448 = vadd.f32 %v1433, %v2272
    %v2449 = vadd.f32 %v1434, %v2375
    %v2450 = vadd.f32 %v1435, %v2161
    %v2451 = vadd.f32 %v1436, %v2163
    %v2452 = vadd.f32 %v1437, %v2274
    %v2453 = vadd.f32 %v1438, %v2276
    %v2454 = vadd.f32 %v1439, %v2378
    %v2455 = vadd.f32 %v1440, %v2167
    %v2456 = vadd.f32 %v1441, %v2169
    %v2457 = vadd.f32 %v1442, %v2280
    %v2458 = vadd.f32 %v1443, %v2282
    %v2459 = vadd.f32 %v1444, %v2383
    %v2460 = vadd.f32 %v1445, %v2171
    %v2461 = vadd.f32 %v1446, %v2173
    %v2462 = vadd.f32 %v1447, %v2284
    %v2463 = vadd.f32 %v1448, %v2286
    %v2464 = vadd.f32 %v1449, %v2386
    %v2465 = vadd.f32 %v1450, %v2177
    %v2466 = vadd.f32 %v1451, %v2179
    %v2467 = vadd.f32 %v1452, %v2290
    %v2468 = vadd.f32 %v1453, %v2292
    %v2469 = vadd.f32 %v1454, %v2391
    %v2470 = vadd.f32 %v1455, %v2181
    %v2471 = vadd.f32 %v1456, %v2183
    %v2472 = vadd.f32 %v1457, %v2294
    %v2473 = vadd.f32 %v1458, %v2296
    %v2474 = vadd.f32 %v1459, %v2394
    %v2475 = vadd.f32 %v1460, %v2187
    %v2476 = vadd.f32 %v1461, %v2189
    %v2477 = vadd.f32 %v1462, %v2300
    %v2478 = vadd.f32 %v1463, %v2302
    %v2479 = vadd.f32 %v1464, %v2399
    %v2480 = vadd.f32 %v1465, %v2191
    %v2481 = vadd.f32 %v1466, %v2193
    %v2482 = vadd.f32 %v1467, %v2304
    %v2483 = vadd.f32 %v1468, %v2306
    %v2484 = vadd.f32 %v1469, %v2402
    %2485 = vst [vmem:[#allocation13] sm:$0xff] %v2405
    %2486 = vst [vmem:[#allocation13 + $0x8] sm:$0xff] %v2406
    %2487 = vst [vmem:[#allocation13 + $0x10] sm:$0xff] %v2407
    %2488 = vst [vmem:[#allocation13 + $0x18] sm:$0xff] %v2408
    %2489 = vst [vmem:[#allocation13 + $0x20] sm:$0xff] %v2409
    %2490 = vst [vmem:[#allocation13 + $0x28] sm:$0xff] %v2410
    %2491 = vst [vmem:[#allocation13 + $0x30] sm:$0xff] %v2411
    %2492 = vst [vmem:[#allocation13 + $0x38] sm:$0xff] %v2412
    %2493 = vst [vmem:[#allocation13 + $0x40] sm:$0xff] %v2413
    %2494 = vst [vmem:[#allocation13 + $0x48] sm:$0xff] %v2414
    %2495 = vst [vmem:[#allocation13 + $0x50] sm:$0xff] %v2415
    %2496 = vst [vmem:[#allocation13 + $0x58] sm:$0xff] %v2416
    %2497 = vst [vmem:[#allocation13 + $0x60] sm:$0xff] %v2417
    %2498 = vst [vmem:[#allocation13 + $0x68] sm:$0xff] %v2418
    %2499 = vst [vmem:[#allocation13 + $0x70] sm:$0xff] %v2419
    %2500 = vst [vmem:[#allocation13 + $0x78] sm:$0xff] %v2420
    %2501 = vst [vmem:[#allocation13 + $0x80] sm:$0xff] %v2421
    %2502 = vst [vmem:[#allocation13 + $0x88] sm:$0xff] %v2422
    %2503 = vst [vmem:[#allocation13 + $0x90] sm:$0xff] %v2423
    %2504 = vst [vmem:[#allocation13 + $0x98] sm:$0xff] %v2424
    %2505 = vst [vmem:[#allocation13 + $0xa0] sm:$0xff] %v2425
    %2506 = vst [vmem:[#allocation13 + $0xa8] sm:$0xff] %v2426
    %2507 = vst [vmem:[#allocation13 + $0xb0] sm:$0xff] %v2427
    %2508 = vst [vmem:[#allocation13 + $0xb8] sm:$0xff] %v2428
    %2509 = vst [vmem:[#allocation13 + $0xc0] sm:$0xff] %v2429
    %2510 = vst [vmem:[#allocation13 + $0xc8] sm:$0xff] %v2430
    %2511 = vst [vmem:[#allocation13 + $0xd0] sm:$0xff] %v2431
    %2512 = vst [vmem:[#allocation13 + $0xd8] sm:$0xff] %v2432
    %2513 = vst [vmem:[#allocation13 + $0xe0] sm:$0xff] %v2433
    %2514 = vst [vmem:[#allocation13 + $0xe8] sm:$0xff] %v2434
    %2515 = vst [vmem:[#allocation13 + $0xf0] sm:$0xff] %v2435
    %2516 = vst [vmem:[#allocation13 + $0xf8] sm:$0xff] %v2436
    %2517 = vst [vmem:[#allocation13 + $0x100] sm:$0xff] %v2437
    %2518 = vst [vmem:[#allocation13 + $0x108] sm:$0xff] %v2438
    %2519 = vst [vmem:[#allocation13 + $0x110] sm:$0xff] %v2439
    %2520 = vst [vmem:[#allocation13 + $0x118] sm:$0xff] %v2440
    %2521 = vst [vmem:[#allocation13 + $0x120] sm:$0xff] %v2441
    %2522 = vst [vmem:[#allocation13 + $0x128] sm:$0xff] %v2442
    %2523 = vst [vmem:[#allocation13 + $0x130] sm:$0xff] %v2443
    %2524 = vst [vmem:[#allocation13 + $0x138] sm:$0xff] %v2444
    %2525 = vst [vmem:[#allocation13 + $0x140] sm:$0xff] %v2445
    %2526 = vst [vmem:[#allocation13 + $0x148] sm:$0xff] %v2446
    %2527 = vst [vmem:[#allocation13 + $0x150] sm:$0xff] %v2447
    %2528 = vst [vmem:[#allocation13 + $0x158] sm:$0xff] %v2448
    %2529 = vst [vmem:[#allocation13 + $0x160] sm:$0xff] %v2449
    %2530 = vst [vmem:[#allocation13 + $0x168] sm:$0xff] %v2450
    %2531 = vst [vmem:[#allocation13 + $0x170] sm:$0xff] %v2451
    %2532 = vst [vmem:[#allocation13 + $0x178] sm:$0xff] %v2452
    %2533 = vst [vmem:[#allocation13 + $0x180] sm:$0xff] %v2453
    %2534 = vst [vmem:[#allocation13 + $0x188] sm:$0xff] %v2454
    %2535 = vst [vmem:[#allocation13 + $0x190] sm:$0xff] %v2455
    %2536 = vst [vmem:[#allocation13 + $0x198] sm:$0xff] %v2456
    %2537 = vst [vmem:[#allocation13 + $0x1a0] sm:$0xff] %v2457
    %2538 = vst [vmem:[#allocation13 + $0x1a8] sm:$0xff] %v2458
    %2539 = vst [vmem:[#allocation13 + $0x1b0] sm:$0xff] %v2459
    %2540 = vst [vmem:[#allocation13 + $0x1b8] sm:$0xff] %v2460
    %2541 = vst [vmem:[#allocation13 + $0x1c0] sm:$0xff] %v2461
    %2542 = vst [vmem:[#allocation13 + $0x1c8] sm:$0xff] %v2462
    %2543 = vst [vmem:[#allocation13 + $0x1d0] sm:$0xff] %v2463
    %2544 = vst [vmem:[#allocation13 + $0x1d8] sm:$0xff] %v2464
    %2545 = vst [vmem:[#allocation13 + $0x1e0] sm:$0xff] %v2465
    %2546 = vst [vmem:[#allocation13 + $0x1e8] sm:$0xff] %v2466
    %2547 = vst [vmem:[#allocation13 + $0x1f0] sm:$0xff] %v2467
    %2548 = vst [vmem:[#allocation13 + $0x1f8] sm:$0xff] %v2468
    %2549 = vst [vmem:[#allocation13 + $0x200] sm:$0xff] %v2469
    %2550 = vst [vmem:[#allocation13 + $0x208] sm:$0xff] %v2470
    %2551 = vst [vmem:[#allocation13 + $0x210] sm:$0xff] %v2471
    %2552 = vst [vmem:[#allocation13 + $0x218] sm:$0xff] %v2472
    %2553 = vst [vmem:[#allocation13 + $0x220] sm:$0xff] %v2473
    %2554 = vst [vmem:[#allocation13 + $0x228] sm:$0xff] %v2474
    %2555 = vst [vmem:[#allocation13 + $0x230] sm:$0xff] %v2475
    %2556 = vst [vmem:[#allocation13 + $0x238] sm:$0xff] %v2476
    %2557 = vst [vmem:[#allocation13 + $0x240] sm:$0xff] %v2477
    %2558 = vst [vmem:[#allocation13 + $0x248] sm:$0xff] %v2478
    %2559 = vst [vmem:[#allocation13 + $0x250] sm:$0xff] %v2479
    %2560 = vst [vmem:[#allocation13 + $0x258] sm:$0xff] %v2480
    %2561 = vst [vmem:[#allocation13 + $0x260] sm:$0xff] %v2481
    %2562 = vst [vmem:[#allocation13 + $0x268] sm:$0xff] %v2482
    %2563 = vst [vmem:[#allocation13 + $0x270] sm:$0xff] %v2483
    %2564 = vst [vmem:[#allocation13 + $0x278] sm:$0xff] %v2484
    // Predicated region
    $region54: #{tpu_custom_call.1} parent=1 // pred_check
      _
    $region55: #{tpu_custom_call.1} parent=1 // pred_check_branch
      %2566 = sbr.rel (0) target = $region57
    $region56: #{tpu_custom_call.1} parent=1 // pred_region
      %s2568 = ssub.s32 10240, 10240
      %2569 = vsyncadd [#allocation6], %s2568
      %s2570 = sshll.u32 [#allocation13], 4
      %s2571 = int_to_ptr.vmem [resolvable:$true] %s2570
      %2576 = dma.vmem_to_hbm [thread:$0]  %s2571, 10240, %s5, [#allocation6], 640, 640, 40
    $region57: #{tpu_custom_call.1} parent=1 // pred_fallthru
      _
    // Predicated region
    $region58: #{tpu_custom_call.1} parent=1 // pred_check
      _
    $region59: #{tpu_custom_call.1} parent=1 // pred_check_branch
      %2578 = sbr.rel (0) target = $region61
    $region60: #{tpu_custom_call.1} parent=1 // pred_region
      %2579 = dma.done [#allocation6], 10240
    $region61: #{tpu_custom_call.1} parent=1 // pred_fallthru
      _
    %2580 = vsyncpa [#allocation5], 1
    %2581 = vsyncpa [#allocation8], 1
    %2582 = vsyncpa [#allocation11], 1
    %2583 = vsyncpa [#allocation6], 1

</llo_original>
